<compile_context>
chip_gen: v6e
topology: v6e:2x2x1
jax: 0.10.0
libtpu: 0.0.40
codegen_flags: <defaults>
</compile_context>

<pallas_src>
import functools

import jax
import jax.numpy as jnp
import numpy as np
from jax.experimental import pallas as pl
from jax.experimental.pallas import tpu as pltpu


# ----------------------------- kernels --------------------------------------

def awca_single_slab_kernel(x_ref, w_ref, alpha_ref, o_ref, *, cr,
                            use_bf16_gate):
    """One grid step = one block of batch elements, full (c, hw) slab resident.

    All contractions are matvec-shaped, so they stay on the VPU/XLU (no
    degenerate M=1/N=1 MXU matmuls).  x_ref is re-read (and re-upcast) at each
    stage so no f32 copy of the whole tile stays live across the body.
    """
    conv_col = w_ref[:, 0:1]                         # (c, 1)
    fc1_t = w_ref[:, 1:1 + cr]                       # (c, cr) == fc1.T
    fc2 = w_ref[:, 1 + cr:1 + 2 * cr]                # (c, cr) == fc2

    # -- 1x1 conv logits + softmax stats over the spatial axis.
    logits = jnp.sum(x_ref[...].astype(jnp.float32) * conv_col[None, :, :],
                     axis=1)                                          # (bt, hw)
    m = jnp.max(logits, axis=-1, keepdims=True)                      # (bt, 1)
    e = jnp.exp(logits - m)                                          # (bt, hw)
    l = jnp.sum(e, axis=-1, keepdims=True)                           # (bt, 1)

    # -- spatially weighted channel pooling; the softmax normalisation (1/l)
    #    is folded into the tiny (bt, c) result (exact divide, few scalars).
    acc = jnp.sum(x_ref[...].astype(jnp.float32) * e[:, None, :],
                  axis=-1)                                           # (bt, c)
    y = acc * (1.0 / l)                                              # (bt, c)

    # -- FC(c->cr) -> PReLU -> FC(cr->c) -> sigmoid (cr is tiny; VPU).
    h = jnp.sum(y[:, :, None] * fc1_t[None, :, :], axis=1)           # (bt, cr)
    a = alpha_ref[0]                                                 # PReLU slope
    h = jnp.where(h >= 0, h, a * h)
    s = jnp.sum(h[:, None, :] * fc2[None, :, :], axis=-1)            # (bt, c)
    gate = jax.nn.sigmoid(s)                                         # (bt, c)

    # -- broadcast gate multiply + lane-dense store (re-read x).
    if use_bf16_gate:
        o_ref[...] = x_ref[...] * gate.astype(jnp.bfloat16)[:, :, None]
    else:
        o_ref[...] = (x_ref[...].astype(jnp.float32)
                      * gate[:, :, None]).astype(o_ref.dtype)


def awca_hw_split_kernel(x_ref, w_ref, alpha_ref, o_ref,
                         m_sc, l_sc, acc_sc, gate_sc,
                         *, cr, n_hw, use_bf16_gate):
    """hw-split path for large feature maps (grid axis 1 has 2*n_hw steps).

    Sweep 1 (j < n_hw): online softmax + weighted pooling accumulated in
    VMEM scratch.  Sweep 2 (j >= n_hw): finalize the per-channel gate once,
    then apply it block-by-block and write the output.  Keeps per-step VMEM
    bounded (v7x: 64 MiB physical / 32 MiB scoped).
    """
    j = pl.program_id(1)

    @pl.when(j == 0)
    def _init():
        m_sc[...] = jnp.full(m_sc.shape, -jnp.inf, dtype=jnp.float32)
        l_sc[...] = jnp.zeros(l_sc.shape, dtype=jnp.float32)
        acc_sc[...] = jnp.zeros(acc_sc.shape, dtype=jnp.float32)

    @pl.when(j < n_hw)
    def _accumulate():
        xf = x_ref[...].astype(jnp.float32)                   # (bt, c, hw_blk)
        conv_col = w_ref[:, 0:1]
        logits = jnp.sum(xf * conv_col[None, :, :], axis=1)   # (bt, hw_blk)
        m_new = jnp.maximum(m_sc[...],
                            jnp.max(logits, axis=-1, keepdims=True))
        scale = jnp.exp(m_sc[...] - m_new)                    # (bt, 1)
        p = jnp.exp(logits - m_new)                           # (bt, hw_blk)
        l_sc[...] = scale * l_sc[...] + jnp.sum(p, axis=-1, keepdims=True)
        acc_sc[...] = scale * acc_sc[...] + jnp.sum(xf * p[:, None, :],
                                                    axis=-1)
        m_sc[...] = m_new

    @pl.when(j == n_hw)
    def _finalize_gate():
        y = acc_sc[...] * (1.0 / l_sc[...])                   # (bt, c)
        fc1_t = w_ref[:, 1:1 + cr]
        fc2 = w_ref[:, 1 + cr:1 + 2 * cr]
        h = jnp.sum(y[:, :, None] * fc1_t[None, :, :], axis=1)
        a = alpha_ref[0]
        h = jnp.where(h >= 0, h, a * h)
        s = jnp.sum(h[:, None, :] * fc2[None, :, :], axis=-1)
        gate_sc[...] = jax.nn.sigmoid(s)

    @pl.when(j >= n_hw)
    def _apply():
        gate = gate_sc[...]                                   # (bt, c)
        if use_bf16_gate:
            o_ref[...] = x_ref[...] * gate.astype(jnp.bfloat16)[:, :, None]
        else:
            o_ref[...] = (x_ref[...].astype(jnp.float32)
                          * gate[:, :, None]).astype(o_ref.dtype)


# ----------------------------- wrapper ---------------------------------------

def _device_kind():
    try:
        return jax.devices()[0].device_kind.lower()
    except Exception:
        return ""


def _pick_block_b(b, per_b_bytes, num_tc, target_bytes):
    """Largest batch block whose x tile stays near target_bytes.  On single-TC
    chips (v5e/v6e) prefer the whole batch in one grid step; on v7x split so
    both TensorCores get work."""
    cap = max(1, target_bytes // max(1, per_b_bytes))
    want = b if num_tc <= 1 else max(1, -(-b // num_tc))
    return max(1, min(cap, want))


def awca_forward(x, conv_w, fc1_w, fc2_w, prelu_w, *, block_b=None,
                 force_hw_split=False, target_tile_bytes=2 << 20):
    """AWCA forward.  x: (b, c, h, w) NCHW.  conv_w: (1, c, 1, 1).
    fc1_w: (c//r, c).  fc2_w: (c, c//r).  prelu_w: (1,) (single-parameter
    PReLU, matching the nn.PReLU() default in the module)."""
    b, c, h, w = x.shape
    hw = h * w
    cr = fc1_w.shape[0]
    itemsize = x.dtype.itemsize

    kind = _device_kind()
    is_v7x = "v7" in kind
    has_bf16_vpu = ("v6" in kind) or ("v7" in kind)
    num_tc = 2 if is_v7x else 1
    use_bf16_gate = bool(has_bf16_vpu and x.dtype == jnp.bfloat16)

    # Pack tiny weights into one lane-padded (c, >=128) constant block:
    # columns = [conv_w | fc1_w.T | fc2_w]; constant index_map -> fetched once.
    ncols = max(128, ((1 + 2 * cr + 127) // 128) * 128)
    wpack = jnp.concatenate(
        [conv_w.reshape(c, 1).astype(jnp.float32),
         fc1_w.T.astype(jnp.float32),
         fc2_w.astype(jnp.float32)], axis=1)
    wpack = jnp.pad(wpack, ((0, 0), (0, ncols - (1 + 2 * cr))))
    alpha = prelu_w.reshape(1).astype(jnp.float32)

    x3 = x.reshape(b, c, hw)

    # Path choice: single (c, hw) slab per batch element, or hw-split online
    # softmax when the slab would blow the per-step VMEM budget (v7x has only
    # 64 MiB physical / ~32 MiB scoped VMEM).
    slab_budget = (8 << 20) if is_v7x else (16 << 20)
    hw_split = force_hw_split or (c * hw * 4 > slab_budget)

    hw_blk = None
    if hw_split:
        max_blk = hw - 1 if force_hw_split else hw
        for cand in range(max_blk, 0, -1):
            if hw % cand == 0 and cand % 128 == 0 and (
                    force_hw_split or c * cand * 4 <= slab_budget):
                hw_blk = cand
                break
        if hw_blk is None:
            # TODO(synk): hw not tileable into 128-multiple blocks; a masked
            # ragged-hw tail is not implemented — fall back to one slab.
            hw_split = False

    per_b_bytes = c * (hw_blk if hw_split else hw) * itemsize
    if block_b is None:
        block_b = _pick_block_b(b, per_b_bytes, num_tc, target_tile_bytes)
    block_b = max(1, min(block_b, b))

    grid_b = -(-b // block_b)                 # cdiv; ragged b handled by padding
    b_pad = grid_b * block_b
    if b_pad != b:
        x3 = jnp.pad(x3, ((0, b_pad - b), (0, 0), (0, 0)))

    # Per-generation VMEM limit: double-buffered in+out tiles, f32 temporaries,
    # weight block and margin (v5e's scoped default is only 16 MiB).
    tile_elems = block_b * c * (hw_blk if hw_split else hw)
    need = 4 * tile_elems * itemsize + 6 * tile_elems * 4 + c * ncols * 4 + (4 << 20)
    vmem_cap = (48 << 20) if is_v7x else (100 << 20)
    vmem_limit = int(min(vmem_cap, max(32 << 20, need)))

    batch_sem = (pltpu.CORE_PARALLEL
                 if (is_v7x and grid_b >= 2 and grid_b % num_tc == 0)
                 else pltpu.PARALLEL)

    cost = pl.CostEstimate(
        flops=int(5 * b * c * hw + 4 * b * c * cr),
        transcendentals=int(b * hw + b * c),
        bytes_accessed=int(2 * b * c * hw * itemsize))

    if hw_split:
        n_hw = hw // hw_blk
        kernel = functools.partial(awca_hw_split_kernel, cr=cr, n_hw=n_hw,
                                   use_bf16_gate=use_bf16_gate)
        out = pl.pallas_call(
            kernel,
            out_shape=jax.ShapeDtypeStruct((b_pad, c, hw), x.dtype),
            grid=(grid_b, 2 * n_hw),
            in_specs=[
                pl.BlockSpec((block_b, c, hw_blk),
                             lambda i, j: (i, 0, j % n_hw)),
                pl.BlockSpec((c, ncols), lambda i, j: (0, 0)),
                pl.BlockSpec(memory_space=pltpu.MemorySpace.SMEM),
            ],
            out_specs=pl.BlockSpec(
                (block_b, c, hw_blk),
                lambda i, j: (i, 0, jnp.maximum(j - n_hw, 0))),
            scratch_shapes=[
                pltpu.VMEM((block_b, 1), jnp.float32),   # running max
                pltpu.VMEM((block_b, 1), jnp.float32),   # running sum
                pltpu.VMEM((block_b, c), jnp.float32),   # pooled accumulator
                pltpu.VMEM((block_b, c), jnp.float32),   # per-channel gate
            ],
            compiler_params=pltpu.CompilerParams(
                dimension_semantics=(batch_sem, pltpu.ARBITRARY),
                vmem_limit_bytes=vmem_limit),
            cost_estimate=cost,
        )(x3, wpack, alpha)
    else:
        kernel = functools.partial(awca_single_slab_kernel, cr=cr,
                                   use_bf16_gate=use_bf16_gate)
        out = pl.pallas_call(
            kernel,
            out_shape=jax.ShapeDtypeStruct((b_pad, c, hw), x.dtype),
            grid=(grid_b,),
            in_specs=[
                pl.BlockSpec((block_b, c, hw), lambda i: (i, 0, 0)),
                pl.BlockSpec((c, ncols), lambda i: (0, 0)),
                pl.BlockSpec(memory_space=pltpu.MemorySpace.SMEM),
            ],
            out_specs=pl.BlockSpec((block_b, c, hw), lambda i: (i, 0, 0)),
            compiler_params=pltpu.CompilerParams(
                dimension_semantics=(batch_sem,),
                vmem_limit_bytes=vmem_limit),
            cost_estimate=cost,
        )(x3, wpack, alpha)

    if b_pad != b:
        out = out[:b]
    return out.reshape(b, c, h, w)


# Jit the wrapper so the weight packing / padding fuse into one dispatch.
awca = jax.jit(awca_forward,
               static_argnames=("block_b", "force_hw_split",
                                "target_tile_bytes"))


def awca_ref(x, conv_w, fc1_w, fc2_w, prelu_w):
    """Pure-JAX reference mirroring the PyTorch forward (f32 math)."""
    b, c, h, w = x.shape
    hw = h * w
    x3 = x.reshape(b, c, hw).astype(jnp.float32)
    logits = jnp.einsum('c,bcp->bp', conv_w.reshape(c).astype(jnp.float32), x3)
    attn = jax.nn.softmax(logits, axis=-1)
    y = jnp.einsum('bcp,bp->bc', x3, attn)
    hdn = y @ fc1_w.T.astype(jnp.float32)
    hdn = jnp.where(hdn >= 0, hdn, prelu_w[0] * hdn)
    gate = jax.nn.sigmoid(hdn @ fc2_w.T.astype(jnp.float32))
    return x3.reshape(b, c, h, w) * gate[:, :, None, None]


if __name__ == "__main__":
    # AWCA(channel=32, reduction=16) -> hidden = 2; hw = 256 (lane-dense).
    B, C, H, W = 8, 32, 16, 16
    RED = 16
    CR = C // RED

    key = jax.random.PRNGKey(0)
    kx, kc, k1, k2 = jax.random.split(key, 4)

    x = jax.random.normal(kx, (B, C, H, W), dtype=jnp.float32)
    conv_w = jax.random.normal(kc, (1, C, 1, 1), dtype=jnp.float32) * 0.1
    fc1_w = jax.random.normal(k1, (CR, C), dtype=jnp.float32) * 0.1
    fc2_w = jax.random.normal(k2, (C, CR), dtype=jnp.float32) * 0.1
    prelu_w = jnp.full((1,), 0.25, dtype=jnp.float32)   # nn.PReLU() default

    ref = awca_ref(x, conv_w, fc1_w, fc2_w, prelu_w)

    # 1) f32 I/O, single-slab fast path (exact softmax reciprocal -> tight tol)
    out = awca(x, conv_w, fc1_w, fc2_w, prelu_w)
    jax.block_until_ready(out)
    np.testing.assert_allclose(np.asarray(out), np.asarray(ref),
                               rtol=1e-4, atol=1e-5)

    # 2) bf16 I/O (memory-bound path; compute stays f32 except the final gate
    #    multiply, which is bf16 on chips with a bf16 VPU).
    x_bf16 = x.astype(jnp.bfloat16)
    out_bf16 = awca(x_bf16, conv_w, fc1_w, fc2_w, prelu_w)
    jax.block_until_ready(out_bf16)
    ref_bf16 = awca_ref(x_bf16.astype(jnp.float32), conv_w, fc1_w, fc2_w,
                        prelu_w)
    np.testing.assert_allclose(np.asarray(out_bf16).astype(np.float32),
                               np.asarray(ref_bf16), rtol=3e-2, atol=3e-2)

    # 3) hw-split online-softmax path (large-feature-map / v7x-VMEM regime),
    #    forced at this small shape so the path is exercised.
    out_split = awca(x, conv_w, fc1_w, fc2_w, prelu_w, force_hw_split=True)
    jax.block_until_ready(out_split)
    np.testing.assert_allclose(np.asarray(out_split), np.asarray(ref),
                               rtol=1e-4, atol=1e-4)

    # 4) non-divisor batch (padded last block on 2-TC chips).
    out_odd = awca(x[:5], conv_w, fc1_w, fc2_w, prelu_w)
    jax.block_until_ready(out_odd)
    np.testing.assert_allclose(np.asarray(out_odd), np.asarray(ref[:5]),
                               rtol=1e-4, atol=1e-5)

    print("KERNEL_OK")
</pallas_src>

<mosaic_0001>
module attributes {stable_mosaic.version = 11 : i64} {
  func.func @awca_single_slab_kernel(%arg0: i32, %arg1: memref<8x32x256xf32, #tpu.memory_space<vmem>>, %arg2: memref<32x128xf32, #tpu.memory_space<vmem>>, %arg3: memref<1xf32, #tpu.memory_space<smem>>, %arg4: memref<8x32x256xf32, #tpu.memory_space<vmem>>) attributes {dimension_semantics = [#tpu.dimension_semantics<parallel>], iteration_bounds = array<i64: 1>, scalar_prefetch = 0 : i64, scratch_operands = 0 : i64, tpu.core_type = #tpu.core_type<tc>, window_params = [{transform_indices = @transform_0, window_bounds = array<i64: 8, 32, 256>}, {pipeline_mode = #tpu.pipeline_mode<synchronous>, transform_indices = @transform_1, window_bounds = array<i64: 32, 128>}, {transform_indices = @transform_2, window_bounds = array<i64: 1>}, {transform_indices = @transform_3, window_bounds = array<i64: 8, 32, 256>}]} {
    %c0 = arith.constant 0 : index
    %c0_0 = arith.constant 0 : index
    %0 = vector.load %arg2[%c0, %c0_0] : memref<32x128xf32, #tpu.memory_space<vmem>>, vector<32x1xf32>
    %c0_1 = arith.constant 0 : index
    %c1 = arith.constant 1 : index
    %1 = vector.load %arg2[%c0_1, %c1] : memref<32x128xf32, #tpu.memory_space<vmem>>, vector<32x2xf32>
    %c0_2 = arith.constant 0 : index
    %c3 = arith.constant 3 : index
    %2 = vector.load %arg2[%c0_2, %c3] : memref<32x128xf32, #tpu.memory_space<vmem>>, vector<32x2xf32>
    %c0_3 = arith.constant 0 : index
    %c0_4 = arith.constant 0 : index
    %c0_5 = arith.constant 0 : index
    %3 = vector.load %arg1[%c0_3, %c0_4, %c0_5] : memref<8x32x256xf32, #tpu.memory_space<vmem>>, vector<8x32x256xf32>
    %4 = vector.shape_cast %0 : vector<32x1xf32> to vector<1x32x1xf32>
    %5 = vector.broadcast %4 : vector<1x32x1xf32> to vector<8x32x256xf32>
    %6 = arith.mulf %3, %5 : vector<8x32x256xf32>
    %cst = arith.constant dense<0.000000e+00> : vector<8x256xf32>
    %7 = vector.multi_reduction <add>, %6, %cst [1] : vector<8x32x256xf32> to vector<8x256xf32>
    %cst_6 = arith.constant dense<0xFF800000> : vector<8xf32>
    %8 = vector.multi_reduction <maximumf>, %7, %cst_6 [1] : vector<8x256xf32> to vector<8xf32>
    %9 = vector.shape_cast %8 : vector<8xf32> to vector<8x1xf32>
    %10 = vector.broadcast %9 : vector<8x1xf32> to vector<8x256xf32>
    %11 = arith.subf %7, %10 : vector<8x256xf32>
    %12 = math.exp %11 : vector<8x256xf32>
    %cst_7 = arith.constant dense<0.000000e+00> : vector<8xf32>
    %13 = vector.multi_reduction <add>, %12, %cst_7 [1] : vector<8x256xf32> to vector<8xf32>
    %14 = vector.shape_cast %13 : vector<8xf32> to vector<8x1xf32>
    %c0_8 = arith.constant 0 : index
    %c0_9 = arith.constant 0 : index
    %c0_10 = arith.constant 0 : index
    %15 = vector.load %arg1[%c0_8, %c0_9, %c0_10] : memref<8x32x256xf32, #tpu.memory_space<vmem>>, vector<8x32x256xf32>
    %16 = vector.shape_cast %12 : vector<8x256xf32> to vector<8x1x256xf32>
    %17 = vector.broadcast %16 : vector<8x1x256xf32> to vector<8x32x256xf32>
    %18 = arith.mulf %15, %17 : vector<8x32x256xf32>
    %cst_11 = arith.constant dense<0.000000e+00> : vector<8x32xf32>
    %19 = vector.multi_reduction <add>, %18, %cst_11 [2] : vector<8x32x256xf32> to vector<8x32xf32>
    %cst_12 = arith.constant 1.000000e+00 : f32
    %20 = vector.broadcast %cst_12 : f32 to vector<8x1xf32>
    %21 = arith.divf %20, %14 : vector<8x1xf32>
    %22 = vector.broadcast %21 : vector<8x1xf32> to vector<8x32xf32>
    %23 = arith.mulf %19, %22 : vector<8x32xf32>
    %24 = vector.shape_cast %23 : vector<8x32xf32> to vector<8x32x1xf32>
    %25 = vector.shape_cast %1 : vector<32x2xf32> to vector<1x32x2xf32>
    %26 = vector.broadcast %24 : vector<8x32x1xf32> to vector<8x32x2xf32>
    %27 = vector.broadcast %25 : vector<1x32x2xf32> to vector<8x32x2xf32>
    %28 = arith.mulf %26, %27 : vector<8x32x2xf32>
    %cst_13 = arith.constant dense<0.000000e+00> : vector<8x2xf32>
    %29 = vector.multi_reduction <add>, %28, %cst_13 [1] : vector<8x32x2xf32> to vector<8x2xf32>
    %c0_14 = arith.constant 0 : index
    %30 = memref.load %arg3[%c0_14] : memref<1xf32, #tpu.memory_space<smem>>
    %cst_15 = arith.constant 0.000000e+00 : f32
    %31 = vector.broadcast %cst_15 : f32 to vector<8x2xf32>
    %32 = arith.cmpf oge, %29, %31 : vector<8x2xf32>
    %33 = vector.broadcast %30 : f32 to vector<8x2xf32>
    %34 = arith.mulf %33, %29 : vector<8x2xf32>
    %35 = arith.select %32, %29, %34 : vector<8x2xi1>, vector<8x2xf32>
    %36 = vector.shape_cast %35 : vector<8x2xf32> to vector<8x1x2xf32>
    %37 = vector.shape_cast %2 : vector<32x2xf32> to vector<1x32x2xf32>
    %38 = vector.broadcast %36 : vector<8x1x2xf32> to vector<8x32x2xf32>
    %39 = vector.broadcast %37 : vector<1x32x2xf32> to vector<8x32x2xf32>
    %40 = arith.mulf %38, %39 : vector<8x32x2xf32>
    %cst_16 = arith.constant dense<0.000000e+00> : vector<8x32xf32>
    %41 = vector.multi_reduction <add>, %40, %cst_16 [2] : vector<8x32x2xf32> to vector<8x32xf32>
    %42 = arith.negf %41 : vector<8x32xf32>
    %43 = math.exp %42 : vector<8x32xf32>
    %cst_17 = arith.constant 1.000000e+00 : f32
    %44 = vector.broadcast %cst_17 : f32 to vector<8x32xf32>
    %45 = arith.addf %44, %43 : vector<8x32xf32>
    %46 = arith.divf %44, %45 : vector<8x32xf32>
    %c0_18 = arith.constant 0 : index
    %c0_19 = arith.constant 0 : index
    %c0_20 = arith.constant 0 : index
    %47 = vector.load %arg1[%c0_18, %c0_19, %c0_20] : memref<8x32x256xf32, #tpu.memory_space<vmem>>, vector<8x32x256xf32>
    %48 = vector.shape_cast %46 : vector<8x32xf32> to vector<8x32x1xf32>
    %49 = vector.broadcast %48 : vector<8x32x1xf32> to vector<8x32x256xf32>
    %50 = arith.mulf %47, %49 : vector<8x32x256xf32>
    %c0_21 = arith.constant 0 : index
    %c0_22 = arith.constant 0 : index
    %c0_23 = arith.constant 0 : index
    %51 = vector.load %arg4[%c0_21, %c0_22, %c0_23] : memref<8x32x256xf32, #tpu.memory_space<vmem>>, vector<8x32x256xf32>
    tpu.vector_store %arg4[%c0_21, %c0_22, %c0_23], %50 {strides = array<i32>} : memref<8x32x256xf32, #tpu.memory_space<vmem>>, vector<8x32x256xf32>,
    return
  }
  func.func @transform_0(%arg0: i32) -> (i32, i32, i32) {
    %c0_i32 = arith.constant 0 : i32
    %c0_i32_0 = arith.constant 0 : i32
    %c0_i32_1 = arith.constant 0 : i32
    return %arg0, %c0_i32, %c0_i32_0 : i32, i32, i32
  }
  func.func @transform_1(%arg0: i32) -> (i32, i32) {
    %c0_i32 = arith.constant 0 : i32
    %c0_i32_0 = arith.constant 0 : i32
    %c0_i32_1 = arith.constant 0 : i32
    return %c0_i32, %c0_i32_0 : i32, i32
  }
  func.func @transform_2(%arg0: i32) -> i32 {
    %c0_i32 = arith.constant 0 : i32
    %c0_i32_0 = arith.constant 0 : i32
    return %c0_i32 : i32
  }
  func.func @transform_3(%arg0: i32) -> (i32, i32, i32) {
    %c0_i32 = arith.constant 0 : i32
    %c0_i32_0 = arith.constant 0 : i32
    %c0_i32_1 = arith.constant 0 : i32
    return %arg0, %c0_i32, %c0_i32_0 : i32, i32, i32
  }
}

</mosaic_0001>

<llo_original>
// kernel: awca_forward.1
$region0: #{awca_forward.1}
  #allocation0 [shape = 'u32[]', space=smem, size = 0x4, offset = 0x4, fixed_abs, tag = 'smem constant byte address 0x4 - core index']
  #allocation1 [shape = 'u32[144,128]{1,0:T(1,128)}', space=vmem, size = 0x12000, scoped, tag = 'internal scratch']
  #allocation2 [shape = 'f32[1]{0:T(128)S(6)}', space=smem, size = 0x200, scoped, tag = 'scoped memory for awca_forward.1']
  %s0 = inlined_call_operand.vmem [shape: f32[8,32,256], index: 0, kind: input, shape index: {}]
  %s1 = inlined_call_operand.vmem [shape: f32[32,128], index: 1, kind: input, shape index: {}]
  %s2 = inlined_call_operand.<no memory space> [shape: f32[1], index: 2, kind: input, shape index: {}]
  %s3 = inlined_call_operand.vmem [shape: f32[8,32,256], index: 3, kind: output, shape index: {}]
  %s4 = sld [smem:[#allocation0]]
  $region22: #{awca_forward.1} parent=0
    _
  %s6 = ssub.s32 1, %s4
  %s7 = scalar_select 0, %s6, %s4
  %8 = sst [smem:[#allocation2]] %s2
  // Predicated region
  $region2: #{awca_forward.1} parent=0 // pred_check
    _
  $region3: #{awca_forward.1} parent=0 // pred_check_branch
    %10 = sbr.rel (0) target = $region5
  $region4: #{awca_forward.1} parent=0 // pred_region
    _
  $region5: #{awca_forward.1} parent=0 // pred_fallthru
    _
  // Predicated region
  $region6: #{awca_forward.1} parent=0 // pred_check
    _
  $region7: #{awca_forward.1} parent=0 // pred_check_branch
    %12 = sbr.rel (0) target = $region9
  $region8: #{awca_forward.1} parent=0 // pred_region
    _
  $region9: #{awca_forward.1} parent=0 // pred_fallthru
    _
  // Predicated region
  $region10: #{awca_forward.1} parent=0 // pred_check
    _
  $region11: #{awca_forward.1} parent=0 // pred_check_branch
    %14 = sbr.rel (0) target = $region13
  $region12: #{awca_forward.1} parent=0 // pred_region
    _
  $region13: #{awca_forward.1} parent=0 // pred_fallthru
    _
  %v15 = vld [vmem:[%s1] sm:$0xff]
  %v16 = vld [vmem:[%s1 + $0x8] sm:$0xff]
  %v17 = vld [vmem:[%s1 + $0x10] sm:$0xff]
  %v18 = vld [vmem:[%s1 + $0x18] sm:$0xff]
  %v19 = vld [vmem:[%s0] sm:$0xff]
  %v20 = vld [vmem:[%s0 + $0x8] sm:$0xff]
  %v21 = vld [vmem:[%s0 + $0x10] sm:$0xff]
  %v22 = vld [vmem:[%s0 + $0x18] sm:$0xff]
  %v23 = vld [vmem:[%s0 + $0x20] sm:$0xff]
  %v24 = vld [vmem:[%s0 + $0x28] sm:$0xff]
  %v25 = vld [vmem:[%s0 + $0x30] sm:$0xff]
  %v26 = vld [vmem:[%s0 + $0x38] sm:$0xff]
  %v27 = vld [vmem:[%s0 + $0x40] sm:$0xff]
  %v28 = vld [vmem:[%s0 + $0x48] sm:$0xff]
  %v29 = vld [vmem:[%s0 + $0x50] sm:$0xff]
  %v30 = vld [vmem:[%s0 + $0x58] sm:$0xff]
  %v31 = vld [vmem:[%s0 + $0x60] sm:$0xff]
  %v32 = vld [vmem:[%s0 + $0x68] sm:$0xff]
  %v33 = vld [vmem:[%s0 + $0x70] sm:$0xff]
  %v34 = vld [vmem:[%s0 + $0x78] sm:$0xff]
  %v35 = vld [vmem:[%s0 + $0x80] sm:$0xff]
  %v36 = vld [vmem:[%s0 + $0x88] sm:$0xff]
  %v37 = vld [vmem:[%s0 + $0x90] sm:$0xff]
  %v38 = vld [vmem:[%s0 + $0x98] sm:$0xff]
  %v39 = vld [vmem:[%s0 + $0xa0] sm:$0xff]
  %v40 = vld [vmem:[%s0 + $0xa8] sm:$0xff]
  %v41 = vld [vmem:[%s0 + $0xb0] sm:$0xff]
  %v42 = vld [vmem:[%s0 + $0xb8] sm:$0xff]
  %v43 = vld [vmem:[%s0 + $0xc0] sm:$0xff]
  %v44 = vld [vmem:[%s0 + $0xc8] sm:$0xff]
  %v45 = vld [vmem:[%s0 + $0xd0] sm:$0xff]
  %v46 = vld [vmem:[%s0 + $0xd8] sm:$0xff]
  %v47 = vld [vmem:[%s0 + $0xe0] sm:$0xff]
  %v48 = vld [vmem:[%s0 + $0xe8] sm:$0xff]
  %v49 = vld [vmem:[%s0 + $0xf0] sm:$0xff]
  %v50 = vld [vmem:[%s0 + $0xf8] sm:$0xff]
  %v51 = vld [vmem:[%s0 + $0x100] sm:$0xff]
  %v52 = vld [vmem:[%s0 + $0x108] sm:$0xff]
  %v53 = vld [vmem:[%s0 + $0x110] sm:$0xff]
  %v54 = vld [vmem:[%s0 + $0x118] sm:$0xff]
  %v55 = vld [vmem:[%s0 + $0x120] sm:$0xff]
  %v56 = vld [vmem:[%s0 + $0x128] sm:$0xff]
  %v57 = vld [vmem:[%s0 + $0x130] sm:$0xff]
  %v58 = vld [vmem:[%s0 + $0x138] sm:$0xff]
  %v59 = vld [vmem:[%s0 + $0x140] sm:$0xff]
  %v60 = vld [vmem:[%s0 + $0x148] sm:$0xff]
  %v61 = vld [vmem:[%s0 + $0x150] sm:$0xff]
  %v62 = vld [vmem:[%s0 + $0x158] sm:$0xff]
  %v63 = vld [vmem:[%s0 + $0x160] sm:$0xff]
  %v64 = vld [vmem:[%s0 + $0x168] sm:$0xff]
  %v65 = vld [vmem:[%s0 + $0x170] sm:$0xff]
  %v66 = vld [vmem:[%s0 + $0x178] sm:$0xff]
  %v67 = vld [vmem:[%s0 + $0x180] sm:$0xff]
  %v68 = vld [vmem:[%s0 + $0x188] sm:$0xff]
  %v69 = vld [vmem:[%s0 + $0x190] sm:$0xff]
  %v70 = vld [vmem:[%s0 + $0x198] sm:$0xff]
  %v71 = vld [vmem:[%s0 + $0x1a0] sm:$0xff]
  %v72 = vld [vmem:[%s0 + $0x1a8] sm:$0xff]
  %v73 = vld [vmem:[%s0 + $0x1b0] sm:$0xff]
  %v74 = vld [vmem:[%s0 + $0x1b8] sm:$0xff]
  %v75 = vld [vmem:[%s0 + $0x1c0] sm:$0xff]
  %v76 = vld [vmem:[%s0 + $0x1c8] sm:$0xff]
  %v77 = vld [vmem:[%s0 + $0x1d0] sm:$0xff]
  %v78 = vld [vmem:[%s0 + $0x1d8] sm:$0xff]
  %v79 = vld [vmem:[%s0 + $0x1e0] sm:$0xff]
  %v80 = vld [vmem:[%s0 + $0x1e8] sm:$0xff]
  %v81 = vld [vmem:[%s0 + $0x1f0] sm:$0xff]
  %v82 = vld [vmem:[%s0 + $0x1f8] sm:$0xff]
  %84 = vset.pattern.permute.xlu0 0
  %85 = vperm.xlu0 %84, %v15
  %v86 = vpop.permute.xlu0 %85
  %89 = vset.pattern.permute.xlu0 0
  %90 = vperm.xlu0 %89, %v16
  %v91 = vpop.permute.xlu0 %90
  %94 = vset.pattern.permute.xlu0 0
  %95 = vperm.xlu0 %94, %v17
  %v96 = vpop.permute.xlu0 %95
  %99 = vset.pattern.permute.xlu0 0
  %100 = vperm.xlu0 %99, %v18
  %v101 = vpop.permute.xlu0 %100
  %v103 = vmul.f32 %v19, %v86
  %v104 = vmul.f32 %v20, %v86
  %v105 = vmul.f32 %v21, %v91
  %v106 = vmul.f32 %v22, %v91
  %v107 = vmul.f32 %v23, %v96
  %v108 = vmul.f32 %v24, %v96
  %v109 = vmul.f32 %v25, %v101
  %v110 = vmul.f32 %v26, %v101
  %v111 = vmul.f32 %v27, %v86
  %v112 = vmul.f32 %v28, %v86
  %v113 = vmul.f32 %v29, %v91
  %v114 = vmul.f32 %v30, %v91
  %v115 = vmul.f32 %v31, %v96
  %v116 = vmul.f32 %v32, %v96
  %v117 = vmul.f32 %v33, %v101
  %v118 = vmul.f32 %v34, %v101
  %v119 = vmul.f32 %v35, %v86
  %v120 = vmul.f32 %v36, %v86
  %v121 = vmul.f32 %v37, %v91
  %v122 = vmul.f32 %v38, %v91
  %v123 = vmul.f32 %v39, %v96
  %v124 = vmul.f32 %v40, %v96
  %v125 = vmul.f32 %v41, %v101
  %v126 = vmul.f32 %v42, %v101
  %v127 = vmul.f32 %v43, %v86
  %v128 = vmul.f32 %v44, %v86
  %v129 = vmul.f32 %v45, %v91
  %v130 = vmul.f32 %v46, %v91
  %v131 = vmul.f32 %v47, %v96
  %v132 = vmul.f32 %v48, %v96
  %v133 = vmul.f32 %v49, %v101
  %v134 = vmul.f32 %v50, %v101
  %v135 = vmul.f32 %v51, %v86
  %v136 = vmul.f32 %v52, %v86
  %v137 = vmul.f32 %v53, %v91
  %v138 = vmul.f32 %v54, %v91
  %v139 = vmul.f32 %v55, %v96
  %v140 = vmul.f32 %v56, %v96
  %v141 = vmul.f32 %v57, %v101
  %v142 = vmul.f32 %v58, %v101
  %v143 = vmul.f32 %v59, %v86
  %v144 = vmul.f32 %v60, %v86
  %v145 = vmul.f32 %v61, %v91
  %v146 = vmul.f32 %v62, %v91
  %v147 = vmul.f32 %v63, %v96
  %v148 = vmul.f32 %v64, %v96
  %v149 = vmul.f32 %v65, %v101
  %v150 = vmul.f32 %v66, %v101
  %v151 = vmul.f32 %v67, %v86
  %v152 = vmul.f32 %v68, %v86
  %v153 = vmul.f32 %v69, %v91
  %v154 = vmul.f32 %v70, %v91
  %v155 = vmul.f32 %v71, %v96
  %v156 = vmul.f32 %v72, %v96
  %v157 = vmul.f32 %v73, %v101
  %v158 = vmul.f32 %v74, %v101
  %v159 = vmul.f32 %v75, %v86
  %v160 = vmul.f32 %v76, %v86
  %v161 = vmul.f32 %v77, %v91
  %v162 = vmul.f32 %v78, %v91
  %v163 = vmul.f32 %v79, %v96
  %v164 = vmul.f32 %v80, %v96
  %v165 = vmul.f32 %v81, %v101
  %v166 = vmul.f32 %v82, %v101
  %v167 = vadd.f32 %v103, %v105
  %v168 = vadd.f32 %v167, %v107
  %v169 = vadd.f32 %v168, %v109
  %v170 = vrot.slane %v169, 4
  %v171 = vadd.f32 %v169, %v170
  %v172 = vrot.slane %v171, 2
  %v173 = vadd.f32 %v171, %v172
  %v174 = vrot.slane %v173, 1
  %v175 = vadd.f32 %v173, %v174
  %v176 = vadd.f32 %v104, %v106
  %v177 = vadd.f32 %v176, %v108
  %v178 = vadd.f32 %v177, %v110
  %v179 = vrot.slane %v178, 4
  %v180 = vadd.f32 %v178, %v179
  %v181 = vrot.slane %v180, 2
  %v182 = vadd.f32 %v180, %v181
  %v183 = vrot.slane %v182, 1
  %v184 = vadd.f32 %v182, %v183
  %v185 = vadd.f32 %v111, %v113
  %v186 = vadd.f32 %v185, %v115
  %v187 = vadd.f32 %v186, %v117
  %v188 = vrot.slane %v187, 4
  %v189 = vadd.f32 %v187, %v188
  %v190 = vrot.slane %v189, 2
  %v191 = vadd.f32 %v189, %v190
  %v192 = vrot.slane %v191, 1
  %v193 = vadd.f32 %v191, %v192
  %v194 = vadd.f32 %v112, %v114
  %v195 = vadd.f32 %v194, %v116
  %v196 = vadd.f32 %v195, %v118
  %v197 = vrot.slane %v196, 4
  %v198 = vadd.f32 %v196, %v197
  %v199 = vrot.slane %v198, 2
  %v200 = vadd.f32 %v198, %v199
  %v201 = vrot.slane %v200, 1
  %v202 = vadd.f32 %v200, %v201
  %v203 = vadd.f32 %v119, %v121
  %v204 = vadd.f32 %v203, %v123
  %v205 = vadd.f32 %v204, %v125
  %v206 = vrot.slane %v205, 4
  %v207 = vadd.f32 %v205, %v206
  %v208 = vrot.slane %v207, 2
  %v209 = vadd.f32 %v207, %v208
  %v210 = vrot.slane %v209, 1
  %v211 = vadd.f32 %v209, %v210
  %v212 = vadd.f32 %v120, %v122
  %v213 = vadd.f32 %v212, %v124
  %v214 = vadd.f32 %v213, %v126
  %v215 = vrot.slane %v214, 4
  %v216 = vadd.f32 %v214, %v215
  %v217 = vrot.slane %v216, 2
  %v218 = vadd.f32 %v216, %v217
  %v219 = vrot.slane %v218, 1
  %v220 = vadd.f32 %v218, %v219
  %v221 = vadd.f32 %v127, %v129
  %v222 = vadd.f32 %v221, %v131
  %v223 = vadd.f32 %v222, %v133
  %v224 = vrot.slane %v223, 4
  %v225 = vadd.f32 %v223, %v224
  %v226 = vrot.slane %v225, 2
  %v227 = vadd.f32 %v225, %v226
  %v228 = vrot.slane %v227, 1
  %v229 = vadd.f32 %v227, %v228
  %v230 = vadd.f32 %v128, %v130
  %v231 = vadd.f32 %v230, %v132
  %v232 = vadd.f32 %v231, %v134
  %v233 = vrot.slane %v232, 4
  %v234 = vadd.f32 %v232, %v233
  %v235 = vrot.slane %v234, 2
  %v236 = vadd.f32 %v234, %v235
  %v237 = vrot.slane %v236, 1
  %v238 = vadd.f32 %v236, %v237
  %v239 = vadd.f32 %v135, %v137
  %v240 = vadd.f32 %v239, %v139
  %v241 = vadd.f32 %v240, %v141
  %v242 = vrot.slane %v241, 4
  %v243 = vadd.f32 %v241, %v242
  %v244 = vrot.slane %v243, 2
  %v245 = vadd.f32 %v243, %v244
  %v246 = vrot.slane %v245, 1
  %v247 = vadd.f32 %v245, %v246
  %v248 = vadd.f32 %v136, %v138
  %v249 = vadd.f32 %v248, %v140
  %v250 = vadd.f32 %v249, %v142
  %v251 = vrot.slane %v250, 4
  %v252 = vadd.f32 %v250, %v251
  %v253 = vrot.slane %v252, 2
  %v254 = vadd.f32 %v252, %v253
  %v255 = vrot.slane %v254, 1
  %v256 = vadd.f32 %v254, %v255
  %v257 = vadd.f32 %v143, %v145
  %v258 = vadd.f32 %v257, %v147
  %v259 = vadd.f32 %v258, %v149
  %v260 = vrot.slane %v259, 4
  %v261 = vadd.f32 %v259, %v260
  %v262 = vrot.slane %v261, 2
  %v263 = vadd.f32 %v261, %v262
  %v264 = vrot.slane %v263, 1
  %v265 = vadd.f32 %v263, %v264
  %v266 = vadd.f32 %v144, %v146
  %v267 = vadd.f32 %v266, %v148
  %v268 = vadd.f32 %v267, %v150
  %v269 = vrot.slane %v268, 4
  %v270 = vadd.f32 %v268, %v269
  %v271 = vrot.slane %v270, 2
  %v272 = vadd.f32 %v270, %v271
  %v273 = vrot.slane %v272, 1
  %v274 = vadd.f32 %v272, %v273
  %v275 = vadd.f32 %v151, %v153
  %v276 = vadd.f32 %v275, %v155
  %v277 = vadd.f32 %v276, %v157
  %v278 = vrot.slane %v277, 4
  %v279 = vadd.f32 %v277, %v278
  %v280 = vrot.slane %v279, 2
  %v281 = vadd.f32 %v279, %v280
  %v282 = vrot.slane %v281, 1
  %v283 = vadd.f32 %v281, %v282
  %v284 = vadd.f32 %v152, %v154
  %v285 = vadd.f32 %v284, %v156
  %v286 = vadd.f32 %v285, %v158
  %v287 = vrot.slane %v286, 4
  %v288 = vadd.f32 %v286, %v287
  %v289 = vrot.slane %v288, 2
  %v290 = vadd.f32 %v288, %v289
  %v291 = vrot.slane %v290, 1
  %v292 = vadd.f32 %v290, %v291
  %v293 = vadd.f32 %v159, %v161
  %v294 = vadd.f32 %v293, %v163
  %v295 = vadd.f32 %v294, %v165
  %v296 = vrot.slane %v295, 4
  %v297 = vadd.f32 %v295, %v296
  %v298 = vrot.slane %v297, 2
  %v299 = vadd.f32 %v297, %v298
  %v300 = vrot.slane %v299, 1
  %v301 = vadd.f32 %v299, %v300
  %v302 = vadd.f32 %v160, %v162
  %v303 = vadd.f32 %v302, %v164
  %v304 = vadd.f32 %v303, %v166
  %v305 = vrot.slane %v304, 4
  %v306 = vadd.f32 %v304, %v305
  %v307 = vrot.slane %v306, 2
  %v308 = vadd.f32 %v306, %v307
  %v309 = vrot.slane %v308, 1
  %v310 = vadd.f32 %v308, %v309
  %vm327 = vcmask 1041409
  %v328 = vsel %vm327, %v193, %v175
  %vm329 = vcmask 1042434
  %v330 = vsel %vm329, %v211, %v328
  %vm331 = vcmask 1043459
  %v332 = vsel %vm331, %v229, %v330
  %vm333 = vcmask 1044484
  %v334 = vsel %vm333, %v247, %v332
  %vm335 = vcmask 1045509
  %v336 = vsel %vm335, %v265, %v334
  %vm337 = vcmask 1046534
  %v338 = vsel %vm337, %v283, %v336
  %vm339 = vcmask 1047559
  %v340 = vsel %vm339, %v301, %v338
  %v341 = vsel %vm327, %v202, %v184
  %v342 = vsel %vm329, %v220, %v341
  %v343 = vsel %vm331, %v238, %v342
  %v344 = vsel %vm333, %v256, %v343
  %v345 = vsel %vm335, %v274, %v344
  %v346 = vsel %vm337, %v292, %v345
  %v347 = vsel %vm339, %v310, %v346
  %v350 = vmax.f32 %v340, %v347
  %351 = vmax.xlane.f32.xlu0 %v350
  %v352 = vpop.xlane.xlu0 %351
  %v354 = vrot.slane %v352, 1
  %v355 = vrot.slane %v352, 2
  %v356 = vrot.slane %v352, 3
  %v357 = vrot.slane %v352, 4
  %v358 = vrot.slane %v352, 5
  %v359 = vrot.slane %v352, 6
  %v360 = vrot.slane %v352, 7
  %v369 = vsub.f32 %v175, %v352
  %v370 = vsub.f32 %v184, %v352
  %v371 = vsub.f32 %v193, %v354
  %v372 = vsub.f32 %v202, %v354
  %v373 = vsub.f32 %v211, %v355
  %v374 = vsub.f32 %v220, %v355
  %v375 = vsub.f32 %v229, %v356
  %v376 = vsub.f32 %v238, %v356
  %v377 = vsub.f32 %v247, %v357
  %v378 = vsub.f32 %v256, %v357
  %v379 = vsub.f32 %v265, %v358
  %v380 = vsub.f32 %v274, %v358
  %v381 = vsub.f32 %v283, %v359
  %v382 = vsub.f32 %v292, %v359
  %v383 = vsub.f32 %v301, %v360
  %v384 = vsub.f32 %v310, %v360
  %v385 = vmul.f32 %v369, 1.442695
  %v386 = vpow.pop %v385
  %v387 = vmul.f32 %v370, 1.442695
  %v388 = vpow.pop %v387
  %v389 = vmul.f32 %v371, 1.442695
  %v390 = vpow.pop %v389
  %v391 = vmul.f32 %v372, 1.442695
  %v392 = vpow.pop %v391
  %v393 = vmul.f32 %v373, 1.442695
  %v394 = vpow.pop %v393
  %v395 = vmul.f32 %v374, 1.442695
  %v396 = vpow.pop %v395
  %v397 = vmul.f32 %v375, 1.442695
  %v398 = vpow.pop %v397
  %v399 = vmul.f32 %v376, 1.442695
  %v400 = vpow.pop %v399
  %v401 = vmul.f32 %v377, 1.442695
  %v402 = vpow.pop %v401
  %v403 = vmul.f32 %v378, 1.442695
  %v404 = vpow.pop %v403
  %v405 = vmul.f32 %v379, 1.442695
  %v406 = vpow.pop %v405
  %v407 = vmul.f32 %v380, 1.442695
  %v408 = vpow.pop %v407
  %v409 = vmul.f32 %v381, 1.442695
  %v410 = vpow.pop %v409
  %v411 = vmul.f32 %v382, 1.442695
  %v412 = vpow.pop %v411
  %v413 = vmul.f32 %v383, 1.442695
  %v414 = vpow.pop %v413
  %v415 = vmul.f32 %v384, 1.442695
  %v416 = vpow.pop %v415
  %v433 = vrot.slane %v390, 7
  %v434 = vsel %vm327, %v433, %v386
  %v435 = vrot.slane %v394, 6
  %v436 = vsel %vm329, %v435, %v434
  %v437 = vrot.slane %v398, 5
  %v438 = vsel %vm331, %v437, %v436
  %v439 = vrot.slane %v402, 4
  %v440 = vsel %vm333, %v439, %v438
  %v441 = vrot.slane %v406, 3
  %v442 = vsel %vm335, %v441, %v440
  %v443 = vrot.slane %v410, 2
  %v444 = vsel %vm337, %v443, %v442
  %v445 = vrot.slane %v414, 1
  %v446 = vsel %vm339, %v445, %v444
  %v447 = vrot.slane %v392, 7
  %v448 = vsel %vm327, %v447, %v388
  %v449 = vrot.slane %v396, 6
  %v450 = vsel %vm329, %v449, %v448
  %v451 = vrot.slane %v400, 5
  %v452 = vsel %vm331, %v451, %v450
  %v453 = vrot.slane %v404, 4
  %v454 = vsel %vm333, %v453, %v452
  %v455 = vrot.slane %v408, 3
  %v456 = vsel %vm335, %v455, %v454
  %v457 = vrot.slane %v412, 2
  %v458 = vsel %vm337, %v457, %v456
  %v459 = vrot.slane %v416, 1
  %v460 = vsel %vm339, %v459, %v458
  %v463 = vadd.f32 %v446, %v460
  %464 = vadd.xlane.f32.xlu0 %v463
  %v465 = vpop.xlane.xlu0 %464
  %v466 = vlaneseq
  %v467 = vshrl.u32 %v466, 7
  %v468 = vsub.s32 0, %v467
  %v469 = vrot.slane %v386, %v468
  %v470 = vlaneseq
  %v471 = vshrl.u32 %v470, 7
  %v472 = vsub.s32 0, %v471
  %v473 = vrot.slane %v388, %v472
  %v474 = vlaneseq
  %v475 = vshrl.u32 %v474, 7
  %v476 = vsub.s32 0, %v475
  %v477 = vrot.slane %v390, %v476
  %v478 = vlaneseq
  %v479 = vshrl.u32 %v478, 7
  %v480 = vsub.s32 0, %v479
  %v481 = vrot.slane %v392, %v480
  %v482 = vlaneseq
  %v483 = vshrl.u32 %v482, 7
  %v484 = vsub.s32 0, %v483
  %v485 = vrot.slane %v394, %v484
  %v486 = vlaneseq
  %v487 = vshrl.u32 %v486, 7
  %v488 = vsub.s32 0, %v487
  %v489 = vrot.slane %v396, %v488
  %v490 = vlaneseq
  %v491 = vshrl.u32 %v490, 7
  %v492 = vsub.s32 0, %v491
  %v493 = vrot.slane %v398, %v492
  %v494 = vlaneseq
  %v495 = vshrl.u32 %v494, 7
  %v496 = vsub.s32 0, %v495
  %v497 = vrot.slane %v400, %v496
  %v498 = vlaneseq
  %v499 = vshrl.u32 %v498, 7
  %v500 = vsub.s32 0, %v499
  %v501 = vrot.slane %v402, %v500
  %v502 = vlaneseq
  %v503 = vshrl.u32 %v502, 7
  %v504 = vsub.s32 0, %v503
  %v505 = vrot.slane %v404, %v504
  %v506 = vlaneseq
  %v507 = vshrl.u32 %v506, 7
  %v508 = vsub.s32 0, %v507
  %v509 = vrot.slane %v406, %v508
  %v510 = vlaneseq
  %v511 = vshrl.u32 %v510, 7
  %v512 = vsub.s32 0, %v511
  %v513 = vrot.slane %v408, %v512
  %v514 = vlaneseq
  %v515 = vshrl.u32 %v514, 7
  %v516 = vsub.s32 0, %v515
  %v517 = vrot.slane %v410, %v516
  %v518 = vlaneseq
  %v519 = vshrl.u32 %v518, 7
  %v520 = vsub.s32 0, %v519
  %v521 = vrot.slane %v412, %v520
  %v522 = vlaneseq
  %v523 = vshrl.u32 %v522, 7
  %v524 = vsub.s32 0, %v523
  %v525 = vrot.slane %v414, %v524
  %v526 = vlaneseq
  %v527 = vshrl.u32 %v526, 7
  %v528 = vsub.s32 0, %v527
  %v529 = vrot.slane %v416, %v528
  %v530 = vmul.f32 %v19, %v469
  %v531 = vmul.f32 %v20, %v473
  %v532 = vmul.f32 %v21, %v469
  %v533 = vmul.f32 %v22, %v473
  %v534 = vmul.f32 %v23, %v469
  %v535 = vmul.f32 %v24, %v473
  %v536 = vmul.f32 %v25, %v469
  %v537 = vmul.f32 %v26, %v473
  %v538 = vmul.f32 %v27, %v477
  %v539 = vmul.f32 %v28, %v481
  %v540 = vmul.f32 %v29, %v477
  %v541 = vmul.f32 %v30, %v481
  %v542 = vmul.f32 %v31, %v477
  %v543 = vmul.f32 %v32, %v481
  %v544 = vmul.f32 %v33, %v477
  %v545 = vmul.f32 %v34, %v481
  %v546 = vmul.f32 %v35, %v485
  %v547 = vmul.f32 %v36, %v489
  %v548 = vmul.f32 %v37, %v485
  %v549 = vmul.f32 %v38, %v489
  %v550 = vmul.f32 %v39, %v485
  %v551 = vmul.f32 %v40, %v489
  %v552 = vmul.f32 %v41, %v485
  %v553 = vmul.f32 %v42, %v489
  %v554 = vmul.f32 %v43, %v493
  %v555 = vmul.f32 %v44, %v497
  %v556 = vmul.f32 %v45, %v493
  %v557 = vmul.f32 %v46, %v497
  %v558 = vmul.f32 %v47, %v493
  %v559 = vmul.f32 %v48, %v497
  %v560 = vmul.f32 %v49, %v493
  %v561 = vmul.f32 %v50, %v497
  %v562 = vmul.f32 %v51, %v501
  %v563 = vmul.f32 %v52, %v505
  %v564 = vmul.f32 %v53, %v501
  %v565 = vmul.f32 %v54, %v505
  %v566 = vmul.f32 %v55, %v501
  %v567 = vmul.f32 %v56, %v505
  %v568 = vmul.f32 %v57, %v501
  %v569 = vmul.f32 %v58, %v505
  %v570 = vmul.f32 %v59, %v509
  %v571 = vmul.f32 %v60, %v513
  %v572 = vmul.f32 %v61, %v509
  %v573 = vmul.f32 %v62, %v513
  %v574 = vmul.f32 %v63, %v509
  %v575 = vmul.f32 %v64, %v513
  %v576 = vmul.f32 %v65, %v509
  %v577 = vmul.f32 %v66, %v513
  %v578 = vmul.f32 %v67, %v517
  %v579 = vmul.f32 %v68, %v521
  %v580 = vmul.f32 %v69, %v517
  %v581 = vmul.f32 %v70, %v521
  %v582 = vmul.f32 %v71, %v517
  %v583 = vmul.f32 %v72, %v521
  %v584 = vmul.f32 %v73, %v517
  %v585 = vmul.f32 %v74, %v521
  %v586 = vmul.f32 %v75, %v525
  %v587 = vmul.f32 %v76, %v529
  %v588 = vmul.f32 %v77, %v525
  %v589 = vmul.f32 %v78, %v529
  %v590 = vmul.f32 %v79, %v525
  %v591 = vmul.f32 %v80, %v529
  %v592 = vmul.f32 %v81, %v525
  %v593 = vmul.f32 %v82, %v529
  %v594 = vadd.f32 %v530, %v531
  %595 = vadd.xlane.f32.xlu0 %v594
  %v596 = vpop.xlane.xlu0 %595
  %v597 = vadd.f32 %v532, %v533
  %598 = vadd.xlane.f32.xlu0 %v597
  %v599 = vpop.xlane.xlu0 %598
  %v600 = vadd.f32 %v534, %v535
  %601 = vadd.xlane.f32.xlu0 %v600
  %v602 = vpop.xlane.xlu0 %601
  %v603 = vadd.f32 %v536, %v537
  %604 = vadd.xlane.f32.xlu0 %v603
  %v605 = vpop.xlane.xlu0 %604
  %v606 = vadd.f32 %v538, %v539
  %607 = vadd.xlane.f32.xlu0 %v606
  %v608 = vpop.xlane.xlu0 %607
  %v609 = vadd.f32 %v540, %v541
  %610 = vadd.xlane.f32.xlu0 %v609
  %v611 = vpop.xlane.xlu0 %610
  %v612 = vadd.f32 %v542, %v543
  %613 = vadd.xlane.f32.xlu0 %v612
  %v614 = vpop.xlane.xlu0 %613
  %v615 = vadd.f32 %v544, %v545
  %616 = vadd.xlane.f32.xlu0 %v615
  %v617 = vpop.xlane.xlu0 %616
  %v618 = vadd.f32 %v546, %v547
  %619 = vadd.xlane.f32.xlu0 %v618
  %v620 = vpop.xlane.xlu0 %619
  %v621 = vadd.f32 %v548, %v549
  %622 = vadd.xlane.f32.xlu0 %v621
  %v623 = vpop.xlane.xlu0 %622
  %v624 = vadd.f32 %v550, %v551
  %625 = vadd.xlane.f32.xlu0 %v624
  %v626 = vpop.xlane.xlu0 %625
  %v627 = vadd.f32 %v552, %v553
  %628 = vadd.xlane.f32.xlu0 %v627
  %v629 = vpop.xlane.xlu0 %628
  %v630 = vadd.f32 %v554, %v555
  %631 = vadd.xlane.f32.xlu0 %v630
  %v632 = vpop.xlane.xlu0 %631
  %v633 = vadd.f32 %v556, %v557
  %634 = vadd.xlane.f32.xlu0 %v633
  %v635 = vpop.xlane.xlu0 %634
  %v636 = vadd.f32 %v558, %v559
  %637 = vadd.xlane.f32.xlu0 %v636
  %v638 = vpop.xlane.xlu0 %637
  %v639 = vadd.f32 %v560, %v561
  %640 = vadd.xlane.f32.xlu0 %v639
  %v641 = vpop.xlane.xlu0 %640
  %v642 = vadd.f32 %v562, %v563
  %643 = vadd.xlane.f32.xlu0 %v642
  %v644 = vpop.xlane.xlu0 %643
  %v645 = vadd.f32 %v564, %v565
  %646 = vadd.xlane.f32.xlu0 %v645
  %v647 = vpop.xlane.xlu0 %646
  %v648 = vadd.f32 %v566, %v567
  %649 = vadd.xlane.f32.xlu0 %v648
  %v650 = vpop.xlane.xlu0 %649
  %v651 = vadd.f32 %v568, %v569
  %652 = vadd.xlane.f32.xlu0 %v651
  %v653 = vpop.xlane.xlu0 %652
  %v654 = vadd.f32 %v570, %v571
  %655 = vadd.xlane.f32.xlu0 %v654
  %v656 = vpop.xlane.xlu0 %655
  %v657 = vadd.f32 %v572, %v573
  %658 = vadd.xlane.f32.xlu0 %v657
  %v659 = vpop.xlane.xlu0 %658
  %v660 = vadd.f32 %v574, %v575
  %661 = vadd.xlane.f32.xlu0 %v660
  %v662 = vpop.xlane.xlu0 %661
  %v663 = vadd.f32 %v576, %v577
  %664 = vadd.xlane.f32.xlu0 %v663
  %v665 = vpop.xlane.xlu0 %664
  %v666 = vadd.f32 %v578, %v579
  %667 = vadd.xlane.f32.xlu0 %v666
  %v668 = vpop.xlane.xlu0 %667
  %v669 = vadd.f32 %v580, %v581
  %670 = vadd.xlane.f32.xlu0 %v669
  %v671 = vpop.xlane.xlu0 %670
  %v672 = vadd.f32 %v582, %v583
  %673 = vadd.xlane.f32.xlu0 %v672
  %v674 = vpop.xlane.xlu0 %673
  %v675 = vadd.f32 %v584, %v585
  %676 = vadd.xlane.f32.xlu0 %v675
  %v677 = vpop.xlane.xlu0 %676
  %v678 = vadd.f32 %v586, %v587
  %679 = vadd.xlane.f32.xlu0 %v678
  %v680 = vpop.xlane.xlu0 %679
  %v681 = vadd.f32 %v588, %v589
  %682 = vadd.xlane.f32.xlu0 %v681
  %v683 = vpop.xlane.xlu0 %682
  %v684 = vadd.f32 %v590, %v591
  %685 = vadd.xlane.f32.xlu0 %v684
  %v686 = vpop.xlane.xlu0 %685
  %v687 = vadd.f32 %v592, %v593
  %688 = vadd.xlane.f32.xlu0 %v687
  %v689 = vpop.xlane.xlu0 %688
  %v690 = vrcp.pop %v465
  %v691 = vmul.f32 1.0, %v690
  %v693 = vlaneseq
  %v694 = vshrl.u32 %v693, 7
  %v695 = vsub.s32 0, %v694
  %v696 = vrot.slane %v691, %v695
  %v697 = vlaneseq
  %v698 = vshrl.u32 %v697, 7
  %v699 = vsub.s32 1, %v698
  %v700 = vrot.slane %v691, %v699
  %v701 = vlaneseq
  %v702 = vshrl.u32 %v701, 7
  %v703 = vsub.s32 2, %v702
  %v704 = vrot.slane %v691, %v703
  %v705 = vlaneseq
  %v706 = vshrl.u32 %v705, 7
  %v707 = vsub.s32 3, %v706
  %v708 = vrot.slane %v691, %v707
  %v709 = vlaneseq
  %v710 = vshrl.u32 %v709, 7
  %v711 = vsub.s32 4, %v710
  %v712 = vrot.slane %v691, %v711
  %v713 = vlaneseq
  %v714 = vshrl.u32 %v713, 7
  %v715 = vsub.s32 5, %v714
  %v716 = vrot.slane %v691, %v715
  %v717 = vlaneseq
  %v718 = vshrl.u32 %v717, 7
  %v719 = vsub.s32 6, %v718
  %v720 = vrot.slane %v691, %v719
  %v721 = vlaneseq
  %v722 = vshrl.u32 %v721, 7
  %v723 = vsub.s32 7, %v722
  %v724 = vrot.slane %v691, %v723
  %v733 = vmul.f32 %v596, %v696
  %v734 = vmul.f32 %v599, %v696
  %v735 = vmul.f32 %v602, %v696
  %v736 = vmul.f32 %v605, %v696
  %v737 = vmul.f32 %v608, %v700
  %v738 = vmul.f32 %v611, %v700
  %v739 = vmul.f32 %v614, %v700
  %v740 = vmul.f32 %v617, %v700
  %v741 = vmul.f32 %v620, %v704
  %v742 = vmul.f32 %v623, %v704
  %v743 = vmul.f32 %v626, %v704
  %v744 = vmul.f32 %v629, %v704
  %v745 = vmul.f32 %v632, %v708
  %v746 = vmul.f32 %v635, %v708
  %v747 = vmul.f32 %v638, %v708
  %v748 = vmul.f32 %v641, %v708
  %v749 = vmul.f32 %v644, %v712
  %v750 = vmul.f32 %v647, %v712
  %v751 = vmul.f32 %v650, %v712
  %v752 = vmul.f32 %v653, %v712
  %v753 = vmul.f32 %v656, %v716
  %v754 = vmul.f32 %v659, %v716
  %v755 = vmul.f32 %v662, %v716
  %v756 = vmul.f32 %v665, %v716
  %v757 = vmul.f32 %v668, %v720
  %v758 = vmul.f32 %v671, %v720
  %v759 = vmul.f32 %v674, %v720
  %v760 = vmul.f32 %v677, %v720
  %v761 = vmul.f32 %v680, %v724
  %v762 = vmul.f32 %v683, %v724
  %v763 = vmul.f32 %v686, %v724
  %v764 = vmul.f32 %v689, %v724
  %766 = vset.pattern.permute.xlu0 0
  %767 = vperm.xlu0 %766, %v733
  %v768 = vpop.permute.xlu0 %767
  %771 = vset.pattern.permute.xlu0 0
  %772 = vperm.xlu0 %771, %v734
  %v773 = vpop.permute.xlu0 %772
  %776 = vset.pattern.permute.xlu0 0
  %777 = vperm.xlu0 %776, %v735
  %v778 = vpop.permute.xlu0 %777
  %781 = vset.pattern.permute.xlu0 0
  %782 = vperm.xlu0 %781, %v736
  %v783 = vpop.permute.xlu0 %782
  %786 = vset.pattern.permute.xlu0 0
  %787 = vperm.xlu0 %786, %v737
  %v788 = vpop.permute.xlu0 %787
  %791 = vset.pattern.permute.xlu0 0
  %792 = vperm.xlu0 %791, %v738
  %v793 = vpop.permute.xlu0 %792
  %796 = vset.pattern.permute.xlu0 0
  %797 = vperm.xlu0 %796, %v739
  %v798 = vpop.permute.xlu0 %797
  %801 = vset.pattern.permute.xlu0 0
  %802 = vperm.xlu0 %801, %v740
  %v803 = vpop.permute.xlu0 %802
  %806 = vset.pattern.permute.xlu0 0
  %807 = vperm.xlu0 %806, %v741
  %v808 = vpop.permute.xlu0 %807
  %811 = vset.pattern.permute.xlu0 0
  %812 = vperm.xlu0 %811, %v742
  %v813 = vpop.permute.xlu0 %812
  %816 = vset.pattern.permute.xlu0 0
  %817 = vperm.xlu0 %816, %v743
  %v818 = vpop.permute.xlu0 %817
  %821 = vset.pattern.permute.xlu0 0
  %822 = vperm.xlu0 %821, %v744
  %v823 = vpop.permute.xlu0 %822
  %826 = vset.pattern.permute.xlu0 0
  %827 = vperm.xlu0 %826, %v745
  %v828 = vpop.permute.xlu0 %827
  %831 = vset.pattern.permute.xlu0 0
  %832 = vperm.xlu0 %831, %v746
  %v833 = vpop.permute.xlu0 %832
  %836 = vset.pattern.permute.xlu0 0
  %837 = vperm.xlu0 %836, %v747
  %v838 = vpop.permute.xlu0 %837
  %841 = vset.pattern.permute.xlu0 0
  %842 = vperm.xlu0 %841, %v748
  %v843 = vpop.permute.xlu0 %842
  %846 = vset.pattern.permute.xlu0 0
  %847 = vperm.xlu0 %846, %v749
  %v848 = vpop.permute.xlu0 %847
  %851 = vset.pattern.permute.xlu0 0
  %852 = vperm.xlu0 %851, %v750
  %v853 = vpop.permute.xlu0 %852
  %856 = vset.pattern.permute.xlu0 0
  %857 = vperm.xlu0 %856, %v751
  %v858 = vpop.permute.xlu0 %857
  %861 = vset.pattern.permute.xlu0 0
  %862 = vperm.xlu0 %861, %v752
  %v863 = vpop.permute.xlu0 %862
  %866 = vset.pattern.permute.xlu0 0
  %867 = vperm.xlu0 %866, %v753
  %v868 = vpop.permute.xlu0 %867
  %871 = vset.pattern.permute.xlu0 0
  %872 = vperm.xlu0 %871, %v754
  %v873 = vpop.permute.xlu0 %872
  %876 = vset.pattern.permute.xlu0 0
  %877 = vperm.xlu0 %876, %v755
  %v878 = vpop.permute.xlu0 %877
  %881 = vset.pattern.permute.xlu0 0
  %882 = vperm.xlu0 %881, %v756
  %v883 = vpop.permute.xlu0 %882
  %886 = vset.pattern.permute.xlu0 0
  %887 = vperm.xlu0 %886, %v757
  %v888 = vpop.permute.xlu0 %887
  %891 = vset.pattern.permute.xlu0 0
  %892 = vperm.xlu0 %891, %v758
  %v893 = vpop.permute.xlu0 %892
  %896 = vset.pattern.permute.xlu0 0
  %897 = vperm.xlu0 %896, %v759
  %v898 = vpop.permute.xlu0 %897
  %901 = vset.pattern.permute.xlu0 0
  %902 = vperm.xlu0 %901, %v760
  %v903 = vpop.permute.xlu0 %902
  %906 = vset.pattern.permute.xlu0 0
  %907 = vperm.xlu0 %906, %v761
  %v908 = vpop.permute.xlu0 %907
  %911 = vset.pattern.permute.xlu0 0
  %912 = vperm.xlu0 %911, %v762
  %v913 = vpop.permute.xlu0 %912
  %916 = vset.pattern.permute.xlu0 0
  %917 = vperm.xlu0 %916, %v763
  %v918 = vpop.permute.xlu0 %917
  %921 = vset.pattern.permute.xlu0 0
  %922 = vperm.xlu0 %921, %v764
  %v923 = vpop.permute.xlu0 %922
  %v925 = vmul.f32 %v768, %v15
  %v926 = vmul.f32 %v773, %v16
  %v927 = vmul.f32 %v778, %v17
  %v928 = vmul.f32 %v783, %v18
  %v929 = vmul.f32 %v788, %v15
  %v930 = vmul.f32 %v793, %v16
  %v931 = vmul.f32 %v798, %v17
  %v932 = vmul.f32 %v803, %v18
  %v933 = vmul.f32 %v808, %v15
  %v934 = vmul.f32 %v813, %v16
  %v935 = vmul.f32 %v818, %v17
  %v936 = vmul.f32 %v823, %v18
  %v937 = vmul.f32 %v828, %v15
  %v938 = vmul.f32 %v833, %v16
  %v939 = vmul.f32 %v838, %v17
  %v940 = vmul.f32 %v843, %v18
  %v941 = vmul.f32 %v848, %v15
  %v942 = vmul.f32 %v853, %v16
  %v943 = vmul.f32 %v858, %v17
  %v944 = vmul.f32 %v863, %v18
  %v945 = vmul.f32 %v868, %v15
  %v946 = vmul.f32 %v873, %v16
  %v947 = vmul.f32 %v878, %v17
  %v948 = vmul.f32 %v883, %v18
  %v949 = vmul.f32 %v888, %v15
  %v950 = vmul.f32 %v893, %v16
  %v951 = vmul.f32 %v898, %v17
  %v952 = vmul.f32 %v903, %v18
  %v953 = vmul.f32 %v908, %v15
  %v954 = vmul.f32 %v913, %v16
  %v955 = vmul.f32 %v918, %v17
  %v956 = vmul.f32 %v923, %v18
  %vm957 = vcmask 23560
  %v958 = vsel %vm957, %v925, 0.0
  %v959 = vsel %vm957, %v926, 0.0
  %v960 = vadd.f32 %v958, %v959
  %v961 = vsel %vm957, %v927, 0.0
  %v962 = vadd.f32 %v960, %v961
  %v963 = vsel %vm957, %v928, 0.0
  %v964 = vadd.f32 %v962, %v963
  %v965 = vrot.slane %v964, 4
  %v966 = vadd.f32 %v964, %v965
  %v967 = vrot.slane %v966, 2
  %v968 = vadd.f32 %v966, %v967
  %v969 = vrot.slane %v968, 1
  %v970 = vadd.f32 %v968, %v969
  %v971 = vsel %vm957, %v929, 0.0
  %v972 = vsel %vm957, %v930, 0.0
  %v973 = vadd.f32 %v971, %v972
  %v974 = vsel %vm957, %v931, 0.0
  %v975 = vadd.f32 %v973, %v974
  %v976 = vsel %vm957, %v932, 0.0
  %v977 = vadd.f32 %v975, %v976
  %v978 = vrot.slane %v977, 4
  %v979 = vadd.f32 %v977, %v978
  %v980 = vrot.slane %v979, 2
  %v981 = vadd.f32 %v979, %v980
  %v982 = vrot.slane %v981, 1
  %v983 = vadd.f32 %v981, %v982
  %v984 = vsel %vm957, %v933, 0.0
  %v985 = vsel %vm957, %v934, 0.0
  %v986 = vadd.f32 %v984, %v985
  %v987 = vsel %vm957, %v935, 0.0
  %v988 = vadd.f32 %v986, %v987
  %v989 = vsel %vm957, %v936, 0.0
  %v990 = vadd.f32 %v988, %v989
  %v991 = vrot.slane %v990, 4
  %v992 = vadd.f32 %v990, %v991
  %v993 = vrot.slane %v992, 2
  %v994 = vadd.f32 %v992, %v993
  %v995 = vrot.slane %v994, 1
  %v996 = vadd.f32 %v994, %v995
  %v997 = vsel %vm957, %v937, 0.0
  %v998 = vsel %vm957, %v938, 0.0
  %v999 = vadd.f32 %v997, %v998
  %v1000 = vsel %vm957, %v939, 0.0
  %v1001 = vadd.f32 %v999, %v1000
  %v1002 = vsel %vm957, %v940, 0.0
  %v1003 = vadd.f32 %v1001, %v1002
  %v1004 = vrot.slane %v1003, 4
  %v1005 = vadd.f32 %v1003, %v1004
  %v1006 = vrot.slane %v1005, 2
  %v1007 = vadd.f32 %v1005, %v1006
  %v1008 = vrot.slane %v1007, 1
  %v1009 = vadd.f32 %v1007, %v1008
  %v1010 = vsel %vm957, %v941, 0.0
  %v1011 = vsel %vm957, %v942, 0.0
  %v1012 = vadd.f32 %v1010, %v1011
  %v1013 = vsel %vm957, %v943, 0.0
  %v1014 = vadd.f32 %v1012, %v1013
  %v1015 = vsel %vm957, %v944, 0.0
  %v1016 = vadd.f32 %v1014, %v1015
  %v1017 = vrot.slane %v1016, 4
  %v1018 = vadd.f32 %v1016, %v1017
  %v1019 = vrot.slane %v1018, 2
  %v1020 = vadd.f32 %v1018, %v1019
  %v1021 = vrot.slane %v1020, 1
  %v1022 = vadd.f32 %v1020, %v1021
  %v1023 = vsel %vm957, %v945, 0.0
  %v1024 = vsel %vm957, %v946, 0.0
  %v1025 = vadd.f32 %v1023, %v1024
  %v1026 = vsel %vm957, %v947, 0.0
  %v1027 = vadd.f32 %v1025, %v1026
  %v1028 = vsel %vm957, %v948, 0.0
  %v1029 = vadd.f32 %v1027, %v1028
  %v1030 = vrot.slane %v1029, 4
  %v1031 = vadd.f32 %v1029, %v1030
  %v1032 = vrot.slane %v1031, 2
  %v1033 = vadd.f32 %v1031, %v1032
  %v1034 = vrot.slane %v1033, 1
  %v1035 = vadd.f32 %v1033, %v1034
  %v1036 = vsel %vm957, %v949, 0.0
  %v1037 = vsel %vm957, %v950, 0.0
  %v1038 = vadd.f32 %v1036, %v1037
  %v1039 = vsel %vm957, %v951, 0.0
  %v1040 = vadd.f32 %v1038, %v1039
  %v1041 = vsel %vm957, %v952, 0.0
  %v1042 = vadd.f32 %v1040, %v1041
  %v1043 = vrot.slane %v1042, 4
  %v1044 = vadd.f32 %v1042, %v1043
  %v1045 = vrot.slane %v1044, 2
  %v1046 = vadd.f32 %v1044, %v1045
  %v1047 = vrot.slane %v1046, 1
  %v1048 = vadd.f32 %v1046, %v1047
  %v1049 = vsel %vm957, %v953, 0.0
  %v1050 = vsel %vm957, %v954, 0.0
  %v1051 = vadd.f32 %v1049, %v1050
  %v1052 = vsel %vm957, %v955, 0.0
  %v1053 = vadd.f32 %v1051, %v1052
  %v1054 = vsel %vm957, %v956, 0.0
  %v1055 = vadd.f32 %v1053, %v1054
  %v1056 = vrot.slane %v1055, 4
  %v1057 = vadd.f32 %v1055, %v1056
  %v1058 = vrot.slane %v1057, 2
  %v1059 = vadd.f32 %v1057, %v1058
  %v1060 = vrot.slane %v1059, 1
  %v1061 = vadd.f32 %v1059, %v1060
  %s1062 = sld [smem:[#allocation2]]
  %vm1063 = vcmp.ge.f32.partialorder %v970, 0.0
  %vm1064 = vcmp.ge.f32.partialorder %v983, 0.0
  %vm1065 = vcmp.ge.f32.partialorder %v996, 0.0
  %vm1066 = vcmp.ge.f32.partialorder %v1009, 0.0
  %vm1067 = vcmp.ge.f32.partialorder %v1022, 0.0
  %vm1068 = vcmp.ge.f32.partialorder %v1035, 0.0
  %vm1069 = vcmp.ge.f32.partialorder %v1048, 0.0
  %vm1070 = vcmp.ge.f32.partialorder %v1061, 0.0
  %v1071 = vstv %s1062
  %v1072 = vmul.f32 %v1071, %v970
  %v1073 = vmul.f32 %v1071, %v983
  %v1074 = vmul.f32 %v1071, %v996
  %v1075 = vmul.f32 %v1071, %v1009
  %v1076 = vmul.f32 %v1071, %v1022
  %v1077 = vmul.f32 %v1071, %v1035
  %v1078 = vmul.f32 %v1071, %v1048
  %v1079 = vmul.f32 %v1071, %v1061
  %v1080 = vsel %vm1063, %v970, %v1072
  %v1081 = vsel %vm1064, %v983, %v1073
  %v1082 = vsel %vm1065, %v996, %v1074
  %v1083 = vsel %vm1066, %v1009, %v1075
  %v1084 = vsel %vm1067, %v1022, %v1076
  %v1085 = vsel %vm1068, %v1035, %v1077
  %v1086 = vsel %vm1069, %v1048, %v1078
  %v1087 = vsel %vm1070, %v1061, %v1079
  %1088 = vrot.lane.b32.xlu0 %v15, 126
  %v1089 = vpop.permute.xlu0 %1088
  %1090 = vrot.lane.b32.xlu0 %v16, 126
  %v1091 = vpop.permute.xlu0 %1090
  %1092 = vrot.lane.b32.xlu0 %v17, 126
  %v1093 = vpop.permute.xlu0 %1092
  %1094 = vrot.lane.b32.xlu0 %v18, 126
  %v1095 = vpop.permute.xlu0 %1094
  %v1100 = vmul.f32 %v1080, %v1089
  %v1101 = vmul.f32 %v1080, %v1091
  %v1102 = vmul.f32 %v1080, %v1093
  %v1103 = vmul.f32 %v1080, %v1095
  %v1104 = vmul.f32 %v1081, %v1089
  %v1105 = vmul.f32 %v1081, %v1091
  %v1106 = vmul.f32 %v1081, %v1093
  %v1107 = vmul.f32 %v1081, %v1095
  %v1108 = vmul.f32 %v1082, %v1089
  %v1109 = vmul.f32 %v1082, %v1091
  %v1110 = vmul.f32 %v1082, %v1093
  %v1111 = vmul.f32 %v1082, %v1095
  %v1112 = vmul.f32 %v1083, %v1089
  %v1113 = vmul.f32 %v1083, %v1091
  %v1114 = vmul.f32 %v1083, %v1093
  %v1115 = vmul.f32 %v1083, %v1095
  %v1116 = vmul.f32 %v1084, %v1089
  %v1117 = vmul.f32 %v1084, %v1091
  %v1118 = vmul.f32 %v1084, %v1093
  %v1119 = vmul.f32 %v1084, %v1095
  %v1120 = vmul.f32 %v1085, %v1089
  %v1121 = vmul.f32 %v1085, %v1091
  %v1122 = vmul.f32 %v1085, %v1093
  %v1123 = vmul.f32 %v1085, %v1095
  %v1124 = vmul.f32 %v1086, %v1089
  %v1125 = vmul.f32 %v1086, %v1091
  %v1126 = vmul.f32 %v1086, %v1093
  %v1127 = vmul.f32 %v1086, %v1095
  %v1128 = vmul.f32 %v1087, %v1089
  %v1129 = vmul.f32 %v1087, %v1091
  %v1130 = vmul.f32 %v1087, %v1093
  %v1131 = vmul.f32 %v1087, %v1095
  %1164 = vrot.lane.b32.xlu0 %v1100, 127
  %v1165 = vpop.permute.xlu0 %1164
  %1166 = vrot.lane.b32.xlu0 %v1101, 127
  %v1167 = vpop.permute.xlu0 %1166
  %1168 = vrot.lane.b32.xlu0 %v1102, 127
  %v1169 = vpop.permute.xlu0 %1168
  %1170 = vrot.lane.b32.xlu0 %v1103, 127
  %v1171 = vpop.permute.xlu0 %1170
  %1172 = vrot.lane.b32.xlu0 %v1104, 127
  %v1173 = vpop.permute.xlu0 %1172
  %1174 = vrot.lane.b32.xlu0 %v1105, 127
  %v1175 = vpop.permute.xlu0 %1174
  %1176 = vrot.lane.b32.xlu0 %v1106, 127
  %v1177 = vpop.permute.xlu0 %1176
  %1178 = vrot.lane.b32.xlu0 %v1107, 127
  %v1179 = vpop.permute.xlu0 %1178
  %1180 = vrot.lane.b32.xlu0 %v1108, 127
  %v1181 = vpop.permute.xlu0 %1180
  %1182 = vrot.lane.b32.xlu0 %v1109, 127
  %v1183 = vpop.permute.xlu0 %1182
  %1184 = vrot.lane.b32.xlu0 %v1110, 127
  %v1185 = vpop.permute.xlu0 %1184
  %1186 = vrot.lane.b32.xlu0 %v1111, 127
  %v1187 = vpop.permute.xlu0 %1186
  %1188 = vrot.lane.b32.xlu0 %v1112, 127
  %v1189 = vpop.permute.xlu0 %1188
  %1190 = vrot.lane.b32.xlu0 %v1113, 127
  %v1191 = vpop.permute.xlu0 %1190
  %1192 = vrot.lane.b32.xlu0 %v1114, 127
  %v1193 = vpop.permute.xlu0 %1192
  %1194 = vrot.lane.b32.xlu0 %v1115, 127
  %v1195 = vpop.permute.xlu0 %1194
  %1196 = vrot.lane.b32.xlu0 %v1116, 127
  %v1197 = vpop.permute.xlu0 %1196
  %1198 = vrot.lane.b32.xlu0 %v1117, 127
  %v1199 = vpop.permute.xlu0 %1198
  %1200 = vrot.lane.b32.xlu0 %v1118, 127
  %v1201 = vpop.permute.xlu0 %1200
  %1202 = vrot.lane.b32.xlu0 %v1119, 127
  %v1203 = vpop.permute.xlu0 %1202
  %1204 = vrot.lane.b32.xlu0 %v1120, 127
  %v1205 = vpop.permute.xlu0 %1204
  %1206 = vrot.lane.b32.xlu0 %v1121, 127
  %v1207 = vpop.permute.xlu0 %1206
  %1208 = vrot.lane.b32.xlu0 %v1122, 127
  %v1209 = vpop.permute.xlu0 %1208
  %1210 = vrot.lane.b32.xlu0 %v1123, 127
  %v1211 = vpop.permute.xlu0 %1210
  %1212 = vrot.lane.b32.xlu0 %v1124, 127
  %v1213 = vpop.permute.xlu0 %1212
  %1214 = vrot.lane.b32.xlu0 %v1125, 127
  %v1215 = vpop.permute.xlu0 %1214
  %1216 = vrot.lane.b32.xlu0 %v1126, 127
  %v1217 = vpop.permute.xlu0 %1216
  %1218 = vrot.lane.b32.xlu0 %v1127, 127
  %v1219 = vpop.permute.xlu0 %1218
  %1220 = vrot.lane.b32.xlu0 %v1128, 127
  %v1221 = vpop.permute.xlu0 %1220
  %1222 = vrot.lane.b32.xlu0 %v1129, 127
  %v1223 = vpop.permute.xlu0 %1222
  %1224 = vrot.lane.b32.xlu0 %v1130, 127
  %v1225 = vpop.permute.xlu0 %1224
  %1226 = vrot.lane.b32.xlu0 %v1131, 127
  %v1227 = vpop.permute.xlu0 %1226
  %vm1260 = vcmask 15360
  %v1261 = vsel %vm1260, %v1165, 0.0
  %1262 = vadd.xlane.f32.xlu0 %v1261
  %v1263 = vpop.xlane.xlu0 %1262
  %v1264 = vsel %vm1260, %v1167, 0.0
  %1265 = vadd.xlane.f32.xlu0 %v1264
  %v1266 = vpop.xlane.xlu0 %1265
  %v1267 = vsel %vm1260, %v1169, 0.0
  %1268 = vadd.xlane.f32.xlu0 %v1267
  %v1269 = vpop.xlane.xlu0 %1268
  %v1270 = vsel %vm1260, %v1171, 0.0
  %1271 = vadd.xlane.f32.xlu0 %v1270
  %v1272 = vpop.xlane.xlu0 %1271
  %v1273 = vsel %vm1260, %v1173, 0.0
  %1274 = vadd.xlane.f32.xlu0 %v1273
  %v1275 = vpop.xlane.xlu0 %1274
  %v1276 = vsel %vm1260, %v1175, 0.0
  %1277 = vadd.xlane.f32.xlu0 %v1276
  %v1278 = vpop.xlane.xlu0 %1277
  %v1279 = vsel %vm1260, %v1177, 0.0
  %1280 = vadd.xlane.f32.xlu0 %v1279
  %v1281 = vpop.xlane.xlu0 %1280
  %v1282 = vsel %vm1260, %v1179, 0.0
  %1283 = vadd.xlane.f32.xlu0 %v1282
  %v1284 = vpop.xlane.xlu0 %1283
  %v1285 = vsel %vm1260, %v1181, 0.0
  %1286 = vadd.xlane.f32.xlu0 %v1285
  %v1287 = vpop.xlane.xlu0 %1286
  %v1288 = vsel %vm1260, %v1183, 0.0
  %1289 = vadd.xlane.f32.xlu0 %v1288
  %v1290 = vpop.xlane.xlu0 %1289
  %v1291 = vsel %vm1260, %v1185, 0.0
  %1292 = vadd.xlane.f32.xlu0 %v1291
  %v1293 = vpop.xlane.xlu0 %1292
  %v1294 = vsel %vm1260, %v1187, 0.0
  %1295 = vadd.xlane.f32.xlu0 %v1294
  %v1296 = vpop.xlane.xlu0 %1295
  %v1297 = vsel %vm1260, %v1189, 0.0
  %1298 = vadd.xlane.f32.xlu0 %v1297
  %v1299 = vpop.xlane.xlu0 %1298
  %v1300 = vsel %vm1260, %v1191, 0.0
  %1301 = vadd.xlane.f32.xlu0 %v1300
  %v1302 = vpop.xlane.xlu0 %1301
  %v1303 = vsel %vm1260, %v1193, 0.0
  %1304 = vadd.xlane.f32.xlu0 %v1303
  %v1305 = vpop.xlane.xlu0 %1304
  %v1306 = vsel %vm1260, %v1195, 0.0
  %1307 = vadd.xlane.f32.xlu0 %v1306
  %v1308 = vpop.xlane.xlu0 %1307
  %v1309 = vsel %vm1260, %v1197, 0.0
  %1310 = vadd.xlane.f32.xlu0 %v1309
  %v1311 = vpop.xlane.xlu0 %1310
  %v1312 = vsel %vm1260, %v1199, 0.0
  %1313 = vadd.xlane.f32.xlu0 %v1312
  %v1314 = vpop.xlane.xlu0 %1313
  %v1315 = vsel %vm1260, %v1201, 0.0
  %1316 = vadd.xlane.f32.xlu0 %v1315
  %v1317 = vpop.xlane.xlu0 %1316
  %v1318 = vsel %vm1260, %v1203, 0.0
  %1319 = vadd.xlane.f32.xlu0 %v1318
  %v1320 = vpop.xlane.xlu0 %1319
  %v1321 = vsel %vm1260, %v1205, 0.0
  %1322 = vadd.xlane.f32.xlu0 %v1321
  %v1323 = vpop.xlane.xlu0 %1322
  %v1324 = vsel %vm1260, %v1207, 0.0
  %1325 = vadd.xlane.f32.xlu0 %v1324
  %v1326 = vpop.xlane.xlu0 %1325
  %v1327 = vsel %vm1260, %v1209, 0.0
  %1328 = vadd.xlane.f32.xlu0 %v1327
  %v1329 = vpop.xlane.xlu0 %1328
  %v1330 = vsel %vm1260, %v1211, 0.0
  %1331 = vadd.xlane.f32.xlu0 %v1330
  %v1332 = vpop.xlane.xlu0 %1331
  %v1333 = vsel %vm1260, %v1213, 0.0
  %1334 = vadd.xlane.f32.xlu0 %v1333
  %v1335 = vpop.xlane.xlu0 %1334
  %v1336 = vsel %vm1260, %v1215, 0.0
  %1337 = vadd.xlane.f32.xlu0 %v1336
  %v1338 = vpop.xlane.xlu0 %1337
  %v1339 = vsel %vm1260, %v1217, 0.0
  %1340 = vadd.xlane.f32.xlu0 %v1339
  %v1341 = vpop.xlane.xlu0 %1340
  %v1342 = vsel %vm1260, %v1219, 0.0
  %1343 = vadd.xlane.f32.xlu0 %v1342
  %v1344 = vpop.xlane.xlu0 %1343
  %v1345 = vsel %vm1260, %v1221, 0.0
  %1346 = vadd.xlane.f32.xlu0 %v1345
  %v1347 = vpop.xlane.xlu0 %1346
  %v1348 = vsel %vm1260, %v1223, 0.0
  %1349 = vadd.xlane.f32.xlu0 %v1348
  %v1350 = vpop.xlane.xlu0 %1349
  %v1351 = vsel %vm1260, %v1225, 0.0
  %1352 = vadd.xlane.f32.xlu0 %v1351
  %v1353 = vpop.xlane.xlu0 %1352
  %v1354 = vsel %vm1260, %v1227, 0.0
  %1355 = vadd.xlane.f32.xlu0 %v1354
  %v1356 = vpop.xlane.xlu0 %1355
  %v1357 = vxor.u32 %v1263, 2147483648
  %v1358 = vxor.u32 %v1266, 2147483648
  %v1359 = vxor.u32 %v1269, 2147483648
  %v1360 = vxor.u32 %v1272, 2147483648
  %v1361 = vxor.u32 %v1275, 2147483648
  %v1362 = vxor.u32 %v1278, 2147483648
  %v1363 = vxor.u32 %v1281, 2147483648
  %v1364 = vxor.u32 %v1284, 2147483648
  %v1365 = vxor.u32 %v1287, 2147483648
  %v1366 = vxor.u32 %v1290, 2147483648
  %v1367 = vxor.u32 %v1293, 2147483648
  %v1368 = vxor.u32 %v1296, 2147483648
  %v1369 = vxor.u32 %v1299, 2147483648
  %v1370 = vxor.u32 %v1302, 2147483648
  %v1371 = vxor.u32 %v1305, 2147483648
  %v1372 = vxor.u32 %v1308, 2147483648
  %v1373 = vxor.u32 %v1311, 2147483648
  %v1374 = vxor.u32 %v1314, 2147483648
  %v1375 = vxor.u32 %v1317, 2147483648
  %v1376 = vxor.u32 %v1320, 2147483648
  %v1377 = vxor.u32 %v1323, 2147483648
  %v1378 = vxor.u32 %v1326, 2147483648
  %v1379 = vxor.u32 %v1329, 2147483648
  %v1380 = vxor.u32 %v1332, 2147483648
  %v1381 = vxor.u32 %v1335, 2147483648
  %v1382 = vxor.u32 %v1338, 2147483648
  %v1383 = vxor.u32 %v1341, 2147483648
  %v1384 = vxor.u32 %v1344, 2147483648
  %v1385 = vxor.u32 %v1347, 2147483648
  %v1386 = vxor.u32 %v1350, 2147483648
  %v1387 = vxor.u32 %v1353, 2147483648
  %v1388 = vxor.u32 %v1356, 2147483648
  %v1389 = vmul.f32 %v1357, 1.442695
  %v1390 = vpow.pop %v1389
  %v1391 = vmul.f32 %v1358, 1.442695
  %v1392 = vpow.pop %v1391
  %v1393 = vmul.f32 %v1359, 1.442695
  %v1394 = vpow.pop %v1393
  %v1395 = vmul.f32 %v1360, 1.442695
  %v1396 = vpow.pop %v1395
  %v1397 = vmul.f32 %v1361, 1.442695
  %v1398 = vpow.pop %v1397
  %v1399 = vmul.f32 %v1362, 1.442695
  %v1400 = vpow.pop %v1399
  %v1401 = vmul.f32 %v1363, 1.442695
  %v1402 = vpow.pop %v1401
  %v1403 = vmul.f32 %v1364, 1.442695
  %v1404 = vpow.pop %v1403
  %v1405 = vmul.f32 %v1365, 1.442695
  %v1406 = vpow.pop %v1405
  %v1407 = vmul.f32 %v1366, 1.442695
  %v1408 = vpow.pop %v1407
  %v1409 = vmul.f32 %v1367, 1.442695
  %v1410 = vpow.pop %v1409
  %v1411 = vmul.f32 %v1368, 1.442695
  %v1412 = vpow.pop %v1411
  %v1413 = vmul.f32 %v1369, 1.442695
  %v1414 = vpow.pop %v1413
  %v1415 = vmul.f32 %v1370, 1.442695
  %v1416 = vpow.pop %v1415
  %v1417 = vmul.f32 %v1371, 1.442695
  %v1418 = vpow.pop %v1417
  %v1419 = vmul.f32 %v1372, 1.442695
  %v1420 = vpow.pop %v1419
  %v1421 = vmul.f32 %v1373, 1.442695
  %v1422 = vpow.pop %v1421
  %v1423 = vmul.f32 %v1374, 1.442695
  %v1424 = vpow.pop %v1423
  %v1425 = vmul.f32 %v1375, 1.442695
  %v1426 = vpow.pop %v1425
  %v1427 = vmul.f32 %v1376, 1.442695
  %v1428 = vpow.pop %v1427
  %v1429 = vmul.f32 %v1377, 1.442695
  %v1430 = vpow.pop %v1429
  %v1431 = vmul.f32 %v1378, 1.442695
  %v1432 = vpow.pop %v1431
  %v1433 = vmul.f32 %v1379, 1.442695
  %v1434 = vpow.pop %v1433
  %v1435 = vmul.f32 %v1380, 1.442695
  %v1436 = vpow.pop %v1435
  %v1437 = vmul.f32 %v1381, 1.442695
  %v1438 = vpow.pop %v1437
  %v1439 = vmul.f32 %v1382, 1.442695
  %v1440 = vpow.pop %v1439
  %v1441 = vmul.f32 %v1383, 1.442695
  %v1442 = vpow.pop %v1441
  %v1443 = vmul.f32 %v1384, 1.442695
  %v1444 = vpow.pop %v1443
  %v1445 = vmul.f32 %v1385, 1.442695
  %v1446 = vpow.pop %v1445
  %v1447 = vmul.f32 %v1386, 1.442695
  %v1448 = vpow.pop %v1447
  %v1449 = vmul.f32 %v1387, 1.442695
  %v1450 = vpow.pop %v1449
  %v1451 = vmul.f32 %v1388, 1.442695
  %v1452 = vpow.pop %v1451
  %v1453 = vadd.f32 %v1390, 1.0
  %v1454 = vadd.f32 %v1392, 1.0
  %v1455 = vadd.f32 %v1394, 1.0
  %v1456 = vadd.f32 %v1396, 1.0
  %v1457 = vadd.f32 %v1398, 1.0
  %v1458 = vadd.f32 %v1400, 1.0
  %v1459 = vadd.f32 %v1402, 1.0
  %v1460 = vadd.f32 %v1404, 1.0
  %v1461 = vadd.f32 %v1406, 1.0
  %v1462 = vadd.f32 %v1408, 1.0
  %v1463 = vadd.f32 %v1410, 1.0
  %v1464 = vadd.f32 %v1412, 1.0
  %v1465 = vadd.f32 %v1414, 1.0
  %v1466 = vadd.f32 %v1416, 1.0
  %v1467 = vadd.f32 %v1418, 1.0
  %v1468 = vadd.f32 %v1420, 1.0
  %v1469 = vadd.f32 %v1422, 1.0
  %v1470 = vadd.f32 %v1424, 1.0
  %v1471 = vadd.f32 %v1426, 1.0
  %v1472 = vadd.f32 %v1428, 1.0
  %v1473 = vadd.f32 %v1430, 1.0
  %v1474 = vadd.f32 %v1432, 1.0
  %v1475 = vadd.f32 %v1434, 1.0
  %v1476 = vadd.f32 %v1436, 1.0
  %v1477 = vadd.f32 %v1438, 1.0
  %v1478 = vadd.f32 %v1440, 1.0
  %v1479 = vadd.f32 %v1442, 1.0
  %v1480 = vadd.f32 %v1444, 1.0
  %v1481 = vadd.f32 %v1446, 1.0
  %v1482 = vadd.f32 %v1448, 1.0
  %v1483 = vadd.f32 %v1450, 1.0
  %v1484 = vadd.f32 %v1452, 1.0
  %v1485 = vrcp.pop %v1453
  %v1486 = vmul.f32 1.0, %v1485
  %v1487 = vrcp.pop %v1454
  %v1488 = vmul.f32 1.0, %v1487
  %v1489 = vrcp.pop %v1455
  %v1490 = vmul.f32 1.0, %v1489
  %v1491 = vrcp.pop %v1456
  %v1492 = vmul.f32 1.0, %v1491
  %v1493 = vrcp.pop %v1457
  %v1494 = vmul.f32 1.0, %v1493
  %v1495 = vrcp.pop %v1458
  %v1496 = vmul.f32 1.0, %v1495
  %v1497 = vrcp.pop %v1459
  %v1498 = vmul.f32 1.0, %v1497
  %v1499 = vrcp.pop %v1460
  %v1500 = vmul.f32 1.0, %v1499
  %v1501 = vrcp.pop %v1461
  %v1502 = vmul.f32 1.0, %v1501
  %v1503 = vrcp.pop %v1462
  %v1504 = vmul.f32 1.0, %v1503
  %v1505 = vrcp.pop %v1463
  %v1506 = vmul.f32 1.0, %v1505
  %v1507 = vrcp.pop %v1464
  %v1508 = vmul.f32 1.0, %v1507
  %v1509 = vrcp.pop %v1465
  %v1510 = vmul.f32 1.0, %v1509
  %v1511 = vrcp.pop %v1466
  %v1512 = vmul.f32 1.0, %v1511
  %v1513 = vrcp.pop %v1467
  %v1514 = vmul.f32 1.0, %v1513
  %v1515 = vrcp.pop %v1468
  %v1516 = vmul.f32 1.0, %v1515
  %v1517 = vrcp.pop %v1469
  %v1518 = vmul.f32 1.0, %v1517
  %v1519 = vrcp.pop %v1470
  %v1520 = vmul.f32 1.0, %v1519
  %v1521 = vrcp.pop %v1471
  %v1522 = vmul.f32 1.0, %v1521
  %v1523 = vrcp.pop %v1472
  %v1524 = vmul.f32 1.0, %v1523
  %v1525 = vrcp.pop %v1473
  %v1526 = vmul.f32 1.0, %v1525
  %v1527 = vrcp.pop %v1474
  %v1528 = vmul.f32 1.0, %v1527
  %v1529 = vrcp.pop %v1475
  %v1530 = vmul.f32 1.0, %v1529
  %v1531 = vrcp.pop %v1476
  %v1532 = vmul.f32 1.0, %v1531
  %v1533 = vrcp.pop %v1477
  %v1534 = vmul.f32 1.0, %v1533
  %v1535 = vrcp.pop %v1478
  %v1536 = vmul.f32 1.0, %v1535
  %v1537 = vrcp.pop %v1479
  %v1538 = vmul.f32 1.0, %v1537
  %v1539 = vrcp.pop %v1480
  %v1540 = vmul.f32 1.0, %v1539
  %v1541 = vrcp.pop %v1481
  %v1542 = vmul.f32 1.0, %v1541
  %v1543 = vrcp.pop %v1482
  %v1544 = vmul.f32 1.0, %v1543
  %v1545 = vrcp.pop %v1483
  %v1546 = vmul.f32 1.0, %v1545
  %v1547 = vrcp.pop %v1484
  %v1548 = vmul.f32 1.0, %v1547
  %v1549 = vmul.f32 %v19, %v1486
  %v1550 = vmul.f32 %v20, %v1486
  %v1551 = vmul.f32 %v21, %v1488
  %v1552 = vmul.f32 %v22, %v1488
  %v1553 = vmul.f32 %v23, %v1490
  %v1554 = vmul.f32 %v24, %v1490
  %v1555 = vmul.f32 %v25, %v1492
  %v1556 = vmul.f32 %v26, %v1492
  %v1557 = vmul.f32 %v27, %v1494
  %v1558 = vmul.f32 %v28, %v1494
  %v1559 = vmul.f32 %v29, %v1496
  %v1560 = vmul.f32 %v30, %v1496
  %v1561 = vmul.f32 %v31, %v1498
  %v1562 = vmul.f32 %v32, %v1498
  %v1563 = vmul.f32 %v33, %v1500
  %v1564 = vmul.f32 %v34, %v1500
  %v1565 = vmul.f32 %v35, %v1502
  %v1566 = vmul.f32 %v36, %v1502
  %v1567 = vmul.f32 %v37, %v1504
  %v1568 = vmul.f32 %v38, %v1504
  %v1569 = vmul.f32 %v39, %v1506
  %v1570 = vmul.f32 %v40, %v1506
  %v1571 = vmul.f32 %v41, %v1508
  %v1572 = vmul.f32 %v42, %v1508
  %v1573 = vmul.f32 %v43, %v1510
  %v1574 = vmul.f32 %v44, %v1510
  %v1575 = vmul.f32 %v45, %v1512
  %v1576 = vmul.f32 %v46, %v1512
  %v1577 = vmul.f32 %v47, %v1514
  %v1578 = vmul.f32 %v48, %v1514
  %v1579 = vmul.f32 %v49, %v1516
  %v1580 = vmul.f32 %v50, %v1516
  %v1581 = vmul.f32 %v51, %v1518
  %v1582 = vmul.f32 %v52, %v1518
  %v1583 = vmul.f32 %v53, %v1520
  %v1584 = vmul.f32 %v54, %v1520
  %v1585 = vmul.f32 %v55, %v1522
  %v1586 = vmul.f32 %v56, %v1522
  %v1587 = vmul.f32 %v57, %v1524
  %v1588 = vmul.f32 %v58, %v1524
  %v1589 = vmul.f32 %v59, %v1526
  %v1590 = vmul.f32 %v60, %v1526
  %v1591 = vmul.f32 %v61, %v1528
  %v1592 = vmul.f32 %v62, %v1528
  %v1593 = vmul.f32 %v63, %v1530
  %v1594 = vmul.f32 %v64, %v1530
  %v1595 = vmul.f32 %v65, %v1532
  %v1596 = vmul.f32 %v66, %v1532
  %v1597 = vmul.f32 %v67, %v1534
  %v1598 = vmul.f32 %v68, %v1534
  %v1599 = vmul.f32 %v69, %v1536
  %v1600 = vmul.f32 %v70, %v1536
  %v1601 = vmul.f32 %v71, %v1538
  %v1602 = vmul.f32 %v72, %v1538
  %v1603 = vmul.f32 %v73, %v1540
  %v1604 = vmul.f32 %v74, %v1540
  %v1605 = vmul.f32 %v75, %v1542
  %v1606 = vmul.f32 %v76, %v1542
  %v1607 = vmul.f32 %v77, %v1544
  %v1608 = vmul.f32 %v78, %v1544
  %v1609 = vmul.f32 %v79, %v1546
  %v1610 = vmul.f32 %v80, %v1546
  %v1611 = vmul.f32 %v81, %v1548
  %v1612 = vmul.f32 %v82, %v1548
  %1613 = vst [vmem:[%s3] sm:$0xff] %v1549
  %1614 = vst [vmem:[%s3 + $0x8] sm:$0xff] %v1550
  %1615 = vst [vmem:[%s3 + $0x10] sm:$0xff] %v1551
  %1616 = vst [vmem:[%s3 + $0x18] sm:$0xff] %v1552
  %1617 = vst [vmem:[%s3 + $0x20] sm:$0xff] %v1553
  %1618 = vst [vmem:[%s3 + $0x28] sm:$0xff] %v1554
  %1619 = vst [vmem:[%s3 + $0x30] sm:$0xff] %v1555
  %1620 = vst [vmem:[%s3 + $0x38] sm:$0xff] %v1556
  %1621 = vst [vmem:[%s3 + $0x40] sm:$0xff] %v1557
  %1622 = vst [vmem:[%s3 + $0x48] sm:$0xff] %v1558
  %1623 = vst [vmem:[%s3 + $0x50] sm:$0xff] %v1559
  %1624 = vst [vmem:[%s3 + $0x58] sm:$0xff] %v1560
  %1625 = vst [vmem:[%s3 + $0x60] sm:$0xff] %v1561
  %1626 = vst [vmem:[%s3 + $0x68] sm:$0xff] %v1562
  %1627 = vst [vmem:[%s3 + $0x70] sm:$0xff] %v1563
  %1628 = vst [vmem:[%s3 + $0x78] sm:$0xff] %v1564
  %1629 = vst [vmem:[%s3 + $0x80] sm:$0xff] %v1565
  %1630 = vst [vmem:[%s3 + $0x88] sm:$0xff] %v1566
  %1631 = vst [vmem:[%s3 + $0x90] sm:$0xff] %v1567
  %1632 = vst [vmem:[%s3 + $0x98] sm:$0xff] %v1568
  %1633 = vst [vmem:[%s3 + $0xa0] sm:$0xff] %v1569
  %1634 = vst [vmem:[%s3 + $0xa8] sm:$0xff] %v1570
  %1635 = vst [vmem:[%s3 + $0xb0] sm:$0xff] %v1571
  %1636 = vst [vmem:[%s3 + $0xb8] sm:$0xff] %v1572
  %1637 = vst [vmem:[%s3 + $0xc0] sm:$0xff] %v1573
  %1638 = vst [vmem:[%s3 + $0xc8] sm:$0xff] %v1574
  %1639 = vst [vmem:[%s3 + $0xd0] sm:$0xff] %v1575
  %1640 = vst [vmem:[%s3 + $0xd8] sm:$0xff] %v1576
  %1641 = vst [vmem:[%s3 + $0xe0] sm:$0xff] %v1577
  %1642 = vst [vmem:[%s3 + $0xe8] sm:$0xff] %v1578
  %1643 = vst [vmem:[%s3 + $0xf0] sm:$0xff] %v1579
  %1644 = vst [vmem:[%s3 + $0xf8] sm:$0xff] %v1580
  %1645 = vst [vmem:[%s3 + $0x100] sm:$0xff] %v1581
  %1646 = vst [vmem:[%s3 + $0x108] sm:$0xff] %v1582
  %1647 = vst [vmem:[%s3 + $0x110] sm:$0xff] %v1583
  %1648 = vst [vmem:[%s3 + $0x118] sm:$0xff] %v1584
  %1649 = vst [vmem:[%s3 + $0x120] sm:$0xff] %v1585
  %1650 = vst [vmem:[%s3 + $0x128] sm:$0xff] %v1586
  %1651 = vst [vmem:[%s3 + $0x130] sm:$0xff] %v1587
  %1652 = vst [vmem:[%s3 + $0x138] sm:$0xff] %v1588
  %1653 = vst [vmem:[%s3 + $0x140] sm:$0xff] %v1589
  %1654 = vst [vmem:[%s3 + $0x148] sm:$0xff] %v1590
  %1655 = vst [vmem:[%s3 + $0x150] sm:$0xff] %v1591
  %1656 = vst [vmem:[%s3 + $0x158] sm:$0xff] %v1592
  %1657 = vst [vmem:[%s3 + $0x160] sm:$0xff] %v1593
  %1658 = vst [vmem:[%s3 + $0x168] sm:$0xff] %v1594
  %1659 = vst [vmem:[%s3 + $0x170] sm:$0xff] %v1595
  %1660 = vst [vmem:[%s3 + $0x178] sm:$0xff] %v1596
  %1661 = vst [vmem:[%s3 + $0x180] sm:$0xff] %v1597
  %1662 = vst [vmem:[%s3 + $0x188] sm:$0xff] %v1598
  %1663 = vst [vmem:[%s3 + $0x190] sm:$0xff] %v1599
  %1664 = vst [vmem:[%s3 + $0x198] sm:$0xff] %v1600
  %1665 = vst [vmem:[%s3 + $0x1a0] sm:$0xff] %v1601
  %1666 = vst [vmem:[%s3 + $0x1a8] sm:$0xff] %v1602
  %1667 = vst [vmem:[%s3 + $0x1b0] sm:$0xff] %v1603
  %1668 = vst [vmem:[%s3 + $0x1b8] sm:$0xff] %v1604
  %1669 = vst [vmem:[%s3 + $0x1c0] sm:$0xff] %v1605
  %1670 = vst [vmem:[%s3 + $0x1c8] sm:$0xff] %v1606
  %1671 = vst [vmem:[%s3 + $0x1d0] sm:$0xff] %v1607
  %1672 = vst [vmem:[%s3 + $0x1d8] sm:$0xff] %v1608
  %1673 = vst [vmem:[%s3 + $0x1e0] sm:$0xff] %v1609
  %1674 = vst [vmem:[%s3 + $0x1e8] sm:$0xff] %v1610
  %1675 = vst [vmem:[%s3 + $0x1f0] sm:$0xff] %v1611
  %1676 = vst [vmem:[%s3 + $0x1f8] sm:$0xff] %v1612
  // Predicated region
  $region14: #{awca_forward.1} parent=0 // pred_check
    _
  $region15: #{awca_forward.1} parent=0 // pred_check_branch
    %1678 = sbr.rel (0) target = $region17
  $region16: #{awca_forward.1} parent=0 // pred_region
    _
  $region17: #{awca_forward.1} parent=0 // pred_fallthru
    _
  // Predicated region
  $region18: #{awca_forward.1} parent=0 // pred_check
    _
  $region19: #{awca_forward.1} parent=0 // pred_check_branch
    %1680 = sbr.rel (0) target = $region21
  $region20: #{awca_forward.1} parent=0 // pred_region
    _
  $region21: #{awca_forward.1} parent=0 // pred_fallthru
    _

</llo_original>
